<compile_context>
chip_gen: v7x
topology: tpu7x:2x2x1
jax: 0.10.0
libtpu: 0.0.40
codegen_flags: <defaults>
</compile_context>

<pallas_src>
import jax
import jax.numpy as jnp
from jax import lax
from jax.experimental import pallas as pl
from jax.experimental.pallas import tpu as pltpu

LAMDA = 0.5     # config['OPTIM']['lamda']   (RegLoss default)
LAMDA_T = 0.45  # config['OPTIM']['lamda_t'] (unused by the returned values)

LANE = 128       # TPU lane width
EDGE_TILE = 128  # edges per grid step of the edge kernel
ROW_TILE = 256   # table rows per grid step of the Frobenius-norm kernel


def _round_up(x, m):
    return (x + m - 1) // m * m


# ---------------------------------------------------------------------------
# Edge kernel: per-edge dot products + trust-link squared errors.
#   scalar prefetch : left_idx, right_idx (SMEM int32, rows of the stacked
#                     table to gather for each edge endpoint)
#   in              : stacked table (HBM, pl.ANY), edge_in / edge_out / mask
#                     rows (VMEM, (1, EDGE_TILE) tiles)
#   out             : score row, squared-error row (lane-dense (1, EDGE_TILE))
#   scratch         : two (EDGE_TILE, 1, D_pad) gather buffers + 1 DMA sem
# ---------------------------------------------------------------------------
def _edge_kernel(lidx_ref, ridx_ref,
                 table_ref, ein_ref, eout_ref, mask_ref,
                 score_ref, sqerr_ref,
                 lbuf, rbuf, sem):
    te = score_ref.shape[-1]
    d_pad = lbuf.shape[-1]
    base = pl.program_id(0) * te

    # --- DMA row-gather of both endpoints of every edge in this tile --------
    # (dynamic index only on the leading, untiled dim of src and dst, the
    #  same pattern as paged attention; indices come from SMEM prefetch refs)
    @pl.loop(0, te)
    def _issue(e):
        g = base + e
        pltpu.make_async_copy(table_ref.at[lidx_ref[g]], lbuf.at[e],
                              sem.at[0]).start()
        pltpu.make_async_copy(table_ref.at[ridx_ref[g]], rbuf.at[e],
                              sem.at[0]).start()

    @pl.loop(0, 2 * te)
    def _drain(_):
        # all copies have identical byte size, so equal-size waits drain them
        pltpu.make_async_copy(table_ref.at[0], lbuf.at[0], sem.at[0]).wait()

    # --- per-edge dot product, produced lane-dense as (1, TE) via the MXU ---
    l = lbuf[:, 0, :]                                   # (TE, D_pad)
    r = rbuf[:, 0, :]                                   # (TE, D_pad)
    prod = l * r                                        # (TE, D_pad)
    ones = jnp.ones((1, d_pad), jnp.float32)
    score = lax.dot_general(ones, prod,
                            dimension_numbers=(((1,), (1,)), ((), ())),
                            preferred_element_type=jnp.float32)   # (1, TE)
    score_ref[...] = score

    # --- trust-link MSE terms (only 'trusted-by' lanes count via mask) ------
    mask = mask_ref[...]                                # 1.0 on trust edges
    ein = ein_ref[...]                                  # in_deg[dst]
    eout = eout_ref[...]                                # out_deg[src]
    link_pred = pl.reciprocal(1.0 + jnp.exp(-score), approx=True)   # sigmoid
    denom = jnp.where(mask > 0.0, ein + eout, 1.0)
    link_label = jnp.sqrt(ein * pl.reciprocal(denom, approx=True))
    diff = link_pred - link_label
    sqerr_ref[...] = mask * diff * diff


# ---------------------------------------------------------------------------
# Streaming Frobenius norm: grid over row tiles, (1,1) VMEM accumulator.
# ---------------------------------------------------------------------------
def _sq_norm_kernel(x_ref, out_ref, acc_ref):
    @pl.when(pl.program_id(0) == 0)
    def _init():
        acc_ref[...] = jnp.zeros_like(acc_ref)

    x = x_ref[...]
    acc_ref[...] += jnp.sum(jnp.sum(x * x, axis=-1, keepdims=True),
                            axis=0, keepdims=True)

    @pl.when(pl.program_id(0) == pl.num_programs(0) - 1)
    def _finalize():
        out_ref[...] = jnp.sqrt(acc_ref[...])


def _frobenius_norm(x):
    """torch.norm(x) (Frobenius, sqrt of sum of squares), row-tiled."""
    x = x.astype(jnp.float32)
    r, c = x.shape
    r_pad = _round_up(max(r, 1), ROW_TILE)
    c_pad = _round_up(max(c, 1), LANE)
    xp = jnp.zeros((r_pad, c_pad), jnp.float32).at[:r, :c].set(x)
    out = pl.pallas_call(
        _sq_norm_kernel,
        grid=(r_pad // ROW_TILE,),
        in_specs=[pl.BlockSpec((ROW_TILE, c_pad), lambda i: (i, 0))],
        out_specs=pl.BlockSpec((1, 1), lambda i: (0, 0)),
        out_shape=jax.ShapeDtypeStruct((1, 1), jnp.float32),
        scratch_shapes=[pltpu.VMEM((1, 1), jnp.float32)],
        compiler_params=pltpu.CompilerParams(
            dimension_semantics=("arbitrary",),
            vmem_limit_bytes=32 * 1024 * 1024),
    )(xp)
    return out[0, 0]


# ---------------------------------------------------------------------------
# Forward wrapper
# ---------------------------------------------------------------------------
def sorec_forward(p_user, p_item, w_user,
                  pos_u, pos_i, neg_u, neg_i, t_src, t_dst):
    """Returns (pos_score (Ep,1), neg_score (En,1), reg_loss (), link_loss ())."""
    p_user = p_user.astype(jnp.float32)
    p_item = p_item.astype(jnp.float32)
    w_user = w_user.astype(jnp.float32)
    n_user, d = p_user.shape
    n_item = p_item.shape[0]
    d_pad = _round_up(d, LANE)

    def pad_cols(x):
        r = x.shape[0]
        return jnp.zeros((r, d_pad), jnp.float32).at[:, :d].set(x)

    pu, pi, wu = pad_cols(p_user), pad_cols(p_item), pad_cols(w_user)

    # stacked gather table, kept in HBM (pl.ANY) and row-gathered by DMA.
    # rows: [ p_q['user'] | p_q['item'] | y_w['user'] ]
    table = jnp.concatenate([pu, pi, wu], axis=0)
    n_rows = n_user + n_item + n_user
    table = table.reshape(n_rows, 1, d_pad)
    off_pu, off_pi, off_wu = 0, n_user, n_user + n_item

    pos_u = jnp.asarray(pos_u, jnp.int32)
    pos_i = jnp.asarray(pos_i, jnp.int32)
    neg_u = jnp.asarray(neg_u, jnp.int32)
    neg_i = jnp.asarray(neg_i, jnp.int32)
    t_src = jnp.asarray(t_src, jnp.int32)
    t_dst = jnp.asarray(t_dst, jnp.int32)

    ep, en, et = pos_u.shape[0], neg_u.shape[0], t_src.shape[0]
    total = ep + en + et
    e_pad = _round_up(max(total, 1), EDGE_TILE)

    # unified edge list  [pos | neg | trust], padded with index 0 (masked).
    # NOTE: indices are assumed in-range, matching nn.Embedding semantics.
    left = jnp.concatenate([pos_u + off_pu, neg_u + off_pu, t_src + off_wu])
    right = jnp.concatenate([pos_i + off_pi, neg_i + off_pi, t_dst + off_pu])
    left_idx = jnp.zeros((e_pad,), jnp.int32).at[:total].set(left)
    right_idx = jnp.zeros((e_pad,), jnp.int32).at[:total].set(right)

    # 'trusted-by' degrees: pure graph structure, hoisted out of the kernel.
    in_deg = jnp.zeros((n_user,), jnp.float32).at[t_dst].add(1.0)
    out_deg = jnp.zeros((n_user,), jnp.float32).at[t_src].add(1.0)
    edge_in = jnp.zeros((e_pad,), jnp.float32).at[ep + en:total].set(
        in_deg[t_dst]).reshape(1, e_pad)
    edge_out = jnp.zeros((e_pad,), jnp.float32).at[ep + en:total].set(
        out_deg[t_src]).reshape(1, e_pad)
    trust_mask = jnp.zeros((e_pad,), jnp.float32).at[ep + en:total].set(
        1.0).reshape(1, e_pad)

    n_tiles = e_pad // EDGE_TILE
    row_spec = pl.BlockSpec((1, EDGE_TILE), lambda t, *_: (0, t))

    scores, sqerr = pl.pallas_call(
        _edge_kernel,
        grid_spec=pltpu.PrefetchScalarGridSpec(
            num_scalar_prefetch=2,
            grid=(n_tiles,),
            in_specs=[
                pl.BlockSpec(memory_space=pl.ANY),   # stacked table in HBM
                row_spec,                            # edge_in
                row_spec,                            # edge_out
                row_spec,                            # trust mask
            ],
            out_specs=[row_spec, row_spec],
            scratch_shapes=[
                pltpu.VMEM((EDGE_TILE, 1, d_pad), jnp.float32),
                pltpu.VMEM((EDGE_TILE, 1, d_pad), jnp.float32),
                pltpu.SemaphoreType.DMA((1,)),
            ],
        ),
        out_shape=(
            jax.ShapeDtypeStruct((1, e_pad), jnp.float32),
            jax.ShapeDtypeStruct((1, e_pad), jnp.float32),
        ),
        compiler_params=pltpu.CompilerParams(
            dimension_semantics=("parallel",),
            vmem_limit_bytes=32 * 1024 * 1024),
    )(left_idx, right_idx, table, edge_in, edge_out, trust_mask)

    scores = scores[0]                                   # (e_pad,)
    pos_score = scores[:ep].reshape(ep, 1)               # fn.u_dot_v('h','h')
    neg_score = scores[ep:ep + en].reshape(en, 1)
    link_loss = jnp.sum(sqerr) / float(et)               # MSE over trust edges

    # RegLoss: lamda * (||P_u||_F + ||Q_j||_F + ||W_v||_F)  (torch.norm = Frobenius)
    reg_loss = LAMDA * (_frobenius_norm(pu) + _frobenius_norm(pi)
                        + _frobenius_norm(wu))

    return pos_score, neg_score, reg_loss, link_loss


if __name__ == "__main__":
    key = jax.random.PRNGKey(0)
    U, I, D = 8, 16, 32           # user_num, item_num, embedding_size
    E_POS, E_NEG, E_T = 8, 8, 16  # edge counts of the three graphs

    ks = jax.random.split(key, 9)
    # deterministic "embedding table" parameters (HeteroEmbedding weights)
    p_user = 0.1 * jax.random.normal(ks[0], (U, D), jnp.float32)  # p_q['user']
    p_item = 0.1 * jax.random.normal(ks[1], (I, D), jnp.float32)  # p_q['item']
    w_user = 0.1 * jax.random.normal(ks[2], (U, D), jnp.float32)  # y_w['user']
    # (y_w['item'], bias tables, u_bias/i_bias, global_bias exist in the torch
    #  module but do not influence the returned tuple.)

    # deterministic graph structure
    pos_u = jax.random.randint(ks[3], (E_POS,), 0, U)
    pos_i = jax.random.randint(ks[4], (E_POS,), 0, I)
    neg_u = jax.random.randint(ks[5], (E_NEG,), 0, U)
    neg_i = jax.random.randint(ks[6], (E_NEG,), 0, I)
    t_src = jax.random.randint(ks[7], (E_T,), 0, U)
    t_dst = jax.random.randint(ks[8], (E_T,), 0, U)

    outs = sorec_forward(p_user, p_item, w_user,
                         pos_u, pos_i, neg_u, neg_i, t_src, t_dst)
    jax.block_until_ready(outs)
    print("KERNEL_OK")
</pallas_src>

<mosaic_0001>
module attributes {stable_mosaic.version = 11 : i64} {
  func.func @_edge_kernel(%arg0: i32, %arg1: memref<128xi32, #tpu.memory_space<smem>>, %arg2: memref<128xi32, #tpu.memory_space<smem>>, %arg3: memref<32x1x128xf32, #tpu.memory_space<any>>, %arg4: memref<1x128xf32, #tpu.memory_space<vmem>>, %arg5: memref<1x128xf32, #tpu.memory_space<vmem>>, %arg6: memref<1x128xf32, #tpu.memory_space<vmem>>, %arg7: memref<1x128xf32, #tpu.memory_space<vmem>>, %arg8: memref<1x128xf32, #tpu.memory_space<vmem>>, %arg9: memref<128x1x128xf32, #tpu.memory_space<vmem>>, %arg10: memref<128x1x128xf32, #tpu.memory_space<vmem>>, %arg11: memref<1x!tpu.dma_semaphore, #tpu.memory_space<semaphore_mem>>) attributes {dimension_semantics = [#tpu.dimension_semantics<parallel>], iteration_bounds = array<i64: 1>, scalar_prefetch = 2 : i64, scratch_operands = 3 : i64, tpu.core_type = #tpu.core_type<tc>, window_params = [{}, {transform_indices = @transform_1, window_bounds = array<i64: 1, 128>}, {transform_indices = @transform_2, window_bounds = array<i64: 1, 128>}, {transform_indices = @transform_3, window_bounds = array<i64: 1, 128>}, {transform_indices = @transform_4, window_bounds = array<i64: 1, 128>}, {transform_indices = @transform_5, window_bounds = array<i64: 1, 128>}]} {
    %c128_i32 = arith.constant 128 : i32
    %0 = arith.muli %arg0, %c128_i32 : i32
    %c0_i32 = arith.constant 0 : i32
    %c128_i32_0 = arith.constant 128 : i32
    %1 = arith.addi %c0_i32, %c128_i32_0 : i32
    %c1_i32 = arith.constant 1 : i32
    scf.for %arg12 = %c0_i32 to %1 step %c1_i32  : i32 {
      %c1_i32_24 = arith.constant 1 : i32
      %32 = arith.muli %arg12, %c1_i32_24 : i32
      %c0_i32_25 = arith.constant 0 : i32
      %33 = arith.addi %c0_i32_25, %32 : i32
      %34 = arith.addi %0, %33 : i32
      %35 = arith.index_cast %34 : i32 to index
      %36 = memref.load %arg1[%35] : memref<128xi32, #tpu.memory_space<smem>>
      %c0_i32_26 = arith.constant 0 : i32
      %c0_i32_27 = arith.constant 0 : i32
      %c0_i32_28 = arith.constant 0 : i32
      %37 = tpu.memref_slice %arg3[%36, %c0_i32_27, %c0_i32_28] : memref<32x1x128xf32, #tpu.memory_space<any>> -> memref<1x1x128xf32, #tpu.memory_space<any>>
      %38 = tpu.memref_squeeze %37 : memref<1x1x128xf32, #tpu.memory_space<any>> -> memref<1x128xf32, #tpu.memory_space<any>>
      %c0_i32_29 = arith.constant 0 : i32
      %c0_i32_30 = arith.constant 0 : i32
      %39 = tpu.memref_slice %arg9[%33, %c0_i32_29, %c0_i32_30] : memref<128x1x128xf32, #tpu.memory_space<vmem>> -> memref<1x1x128xf32, #tpu.memory_space<vmem>>
      %40 = tpu.memref_squeeze %39 : memref<1x1x128xf32, #tpu.memory_space<vmem>> -> memref<1x128xf32, #tpu.memory_space<vmem>>
      %41 = tpu.memref_slice %arg11[%c0_i32_26] : memref<1x!tpu.dma_semaphore, #tpu.memory_space<semaphore_mem>> -> memref<1x!tpu.dma_semaphore, #tpu.memory_space<semaphore_mem>>
      %42 = tpu.memref_squeeze %41 : memref<1x!tpu.dma_semaphore, #tpu.memory_space<semaphore_mem>> -> memref<!tpu.dma_semaphore, #tpu.memory_space<semaphore_mem>>
      tpu.enqueue_dma source(%38 : memref<1x128xf32, #tpu.memory_space<any>>) target(%40 : memref<1x128xf32, #tpu.memory_space<vmem>>) target_semaphore(%42 : memref<!tpu.dma_semaphore, #tpu.memory_space<semaphore_mem>>)
      %43 = arith.index_cast %34 : i32 to index
      %44 = memref.load %arg2[%43] : memref<128xi32, #tpu.memory_space<smem>>
      %c0_i32_31 = arith.constant 0 : i32
      %c0_i32_32 = arith.constant 0 : i32
      %c0_i32_33 = arith.constant 0 : i32
      %45 = tpu.memref_slice %arg3[%44, %c0_i32_32, %c0_i32_33] : memref<32x1x128xf32, #tpu.memory_space<any>> -> memref<1x1x128xf32, #tpu.memory_space<any>>
      %46 = tpu.memref_squeeze %45 : memref<1x1x128xf32, #tpu.memory_space<any>> -> memref<1x128xf32, #tpu.memory_space<any>>
      %c0_i32_34 = arith.constant 0 : i32
      %c0_i32_35 = arith.constant 0 : i32
      %47 = tpu.memref_slice %arg10[%33, %c0_i32_34, %c0_i32_35] : memref<128x1x128xf32, #tpu.memory_space<vmem>> -> memref<1x1x128xf32, #tpu.memory_space<vmem>>
      %48 = tpu.memref_squeeze %47 : memref<1x1x128xf32, #tpu.memory_space<vmem>> -> memref<1x128xf32, #tpu.memory_space<vmem>>
      %49 = tpu.memref_slice %arg11[%c0_i32_31] : memref<1x!tpu.dma_semaphore, #tpu.memory_space<semaphore_mem>> -> memref<1x!tpu.dma_semaphore, #tpu.memory_space<semaphore_mem>>
      %50 = tpu.memref_squeeze %49 : memref<1x!tpu.dma_semaphore, #tpu.memory_space<semaphore_mem>> -> memref<!tpu.dma_semaphore, #tpu.memory_space<semaphore_mem>>
      tpu.enqueue_dma source(%46 : memref<1x128xf32, #tpu.memory_space<any>>) target(%48 : memref<1x128xf32, #tpu.memory_space<vmem>>) target_semaphore(%50 : memref<!tpu.dma_semaphore, #tpu.memory_space<semaphore_mem>>)
    }
    %c128_i32_1 = arith.constant 128 : i32
    %c0_i32_2 = arith.constant 0 : i32
    %c256_i32 = arith.constant 256 : i32
    %2 = arith.addi %c0_i32_2, %c256_i32 : i32
    %c1_i32_3 = arith.constant 1 : i32
    scf.for %arg12 = %c0_i32_2 to %2 step %c1_i32_3  : i32 {
      %c0_i32_24 = arith.constant 0 : i32
      %c0_i32_25 = arith.constant 0 : i32
      %c0_i32_26 = arith.constant 0 : i32
      %c0_i32_27 = arith.constant 0 : i32
      %c0_i32_28 = arith.constant 0 : i32
      %32 = tpu.memref_slice %arg3[%c0_i32_24, %c0_i32_27, %c0_i32_28] : memref<32x1x128xf32, #tpu.memory_space<any>> -> memref<1x1x128xf32, #tpu.memory_space<any>>
      %33 = tpu.memref_squeeze %32 : memref<1x1x128xf32, #tpu.memory_space<any>> -> memref<1x128xf32, #tpu.memory_space<any>>
      %c0_i32_29 = arith.constant 0 : i32
      %c0_i32_30 = arith.constant 0 : i32
      %34 = tpu.memref_slice %arg9[%c0_i32_25, %c0_i32_29, %c0_i32_30] : memref<128x1x128xf32, #tpu.memory_space<vmem>> -> memref<1x1x128xf32, #tpu.memory_space<vmem>>
      %35 = tpu.memref_squeeze %34 : memref<1x1x128xf32, #tpu.memory_space<vmem>> -> memref<1x128xf32, #tpu.memory_space<vmem>>
      %36 = tpu.memref_slice %arg11[%c0_i32_26] : memref<1x!tpu.dma_semaphore, #tpu.memory_space<semaphore_mem>> -> memref<1x!tpu.dma_semaphore, #tpu.memory_space<semaphore_mem>>
      %37 = tpu.memref_squeeze %36 : memref<1x!tpu.dma_semaphore, #tpu.memory_space<semaphore_mem>> -> memref<!tpu.dma_semaphore, #tpu.memory_space<semaphore_mem>>
      tpu.wait_dma2 semaphore(%37 : memref<!tpu.dma_semaphore, #tpu.memory_space<semaphore_mem>>) src(%33 : memref<1x128xf32, #tpu.memory_space<any>>) dst(%35 : memref<1x128xf32, #tpu.memory_space<vmem>>)
    }
    %c0 = arith.constant 0 : index
    %c0_4 = arith.constant 0 : index
    %c0_5 = arith.constant 0 : index
    %3 = vector.load %arg9[%c0, %c0_4, %c0_5] : memref<128x1x128xf32, #tpu.memory_space<vmem>>, vector<128x1x128xf32>
    %4 = vector.shape_cast %3 : vector<128x1x128xf32> to vector<128x128xf32>
    %c0_6 = arith.constant 0 : index
    %c0_7 = arith.constant 0 : index
    %c0_8 = arith.constant 0 : index
    %5 = vector.load %arg10[%c0_6, %c0_7, %c0_8] : memref<128x1x128xf32, #tpu.memory_space<vmem>>, vector<128x1x128xf32>
    %6 = vector.shape_cast %5 : vector<128x1x128xf32> to vector<128x128xf32>
    %7 = arith.mulf %4, %6 : vector<128x128xf32>
    %cst = arith.constant 1.000000e+00 : f32
    %8 = vector.broadcast %cst : f32 to vector<1x128xf32>
    %cst_9 = arith.constant dense<0.000000e+00> : vector<1x128xf32>
    %9 = tpu.matmul %8, %7, %cst_9 {dimension_numbers = #tpu.dot_dimension_numbers<[1], [1], [0], [0], [0, 0, 1, 0], [], []>} : vector<1x128xf32>, vector<128x128xf32>, vector<1x128xf32> -> vector<1x128xf32>
    %c0_10 = arith.constant 0 : index
    %c0_11 = arith.constant 0 : index
    %10 = vector.load %arg7[%c0_10, %c0_11] : memref<1x128xf32, #tpu.memory_space<vmem>>, vector<1x128xf32>
    tpu.vector_store %arg7[%c0_10, %c0_11], %9 {strides = array<i32>} : memref<1x128xf32, #tpu.memory_space<vmem>>, vector<1x128xf32>,
    %c0_12 = arith.constant 0 : index
    %c0_13 = arith.constant 0 : index
    %11 = vector.load %arg6[%c0_12, %c0_13] : memref<1x128xf32, #tpu.memory_space<vmem>>, vector<1x128xf32>
    %c0_14 = arith.constant 0 : index
    %c0_15 = arith.constant 0 : index
    %12 = vector.load %arg4[%c0_14, %c0_15] : memref<1x128xf32, #tpu.memory_space<vmem>>, vector<1x128xf32>
    %c0_16 = arith.constant 0 : index
    %c0_17 = arith.constant 0 : index
    %13 = vector.load %arg5[%c0_16, %c0_17] : memref<1x128xf32, #tpu.memory_space<vmem>>, vector<1x128xf32>
    %cst_18 = arith.constant 0.000000e+00 : f32
    %14 = vector.broadcast %cst_18 : f32 to vector<1x128xf32>
    %15 = arith.subf %14, %9 : vector<1x128xf32>
    %16 = math.exp %15 : vector<1x128xf32>
    %cst_19 = arith.constant 1.000000e+00 : f32
    %17 = vector.broadcast %cst_19 : f32 to vector<1x128xf32>
    %18 = arith.addf %17, %16 : vector<1x128xf32>
    %19 = tpu.reciprocal %18 {approx = true} : vector<1x128xf32> -> vector<1x128xf32>
    %cst_20 = arith.constant 0.000000e+00 : f32
    %20 = vector.broadcast %cst_20 : f32 to vector<1x128xf32>
    %21 = arith.cmpf ogt, %11, %20 : vector<1x128xf32>
    %22 = arith.addf %12, %13 : vector<1x128xf32>
    %cst_21 = arith.constant 1.000000e+00 : f32
    %23 = vector.broadcast %cst_21 : f32 to vector<1x128xf32>
    %24 = arith.select %21, %22, %23 : vector<1x128xi1>, vector<1x128xf32>
    %25 = tpu.reciprocal %24 {approx = true} : vector<1x128xf32> -> vector<1x128xf32>
    %26 = arith.mulf %12, %25 : vector<1x128xf32>
    %27 = math.sqrt %26 : vector<1x128xf32>
    %28 = arith.subf %19, %27 : vector<1x128xf32>
    %29 = arith.mulf %11, %28 : vector<1x128xf32>
    %30 = arith.mulf %29, %28 : vector<1x128xf32>
    %c0_22 = arith.constant 0 : index
    %c0_23 = arith.constant 0 : index
    %31 = vector.load %arg8[%c0_22, %c0_23] : memref<1x128xf32, #tpu.memory_space<vmem>>, vector<1x128xf32>
    tpu.vector_store %arg8[%c0_22, %c0_23], %30 {strides = array<i32>} : memref<1x128xf32, #tpu.memory_space<vmem>>, vector<1x128xf32>,
    return
  }
  func.func @transform_1(%arg0: i32, %arg1: memref<128xi32, #tpu.memory_space<smem>>, %arg2: memref<128xi32, #tpu.memory_space<smem>>) -> (i32, i32) {
    %c0_i32 = arith.constant 0 : i32
    %c0_i32_0 = arith.constant 0 : i32
    return %c0_i32, %arg0 : i32, i32
  }
  func.func @transform_2(%arg0: i32, %arg1: memref<128xi32, #tpu.memory_space<smem>>, %arg2: memref<128xi32, #tpu.memory_space<smem>>) -> (i32, i32) {
    %c0_i32 = arith.constant 0 : i32
    %c0_i32_0 = arith.constant 0 : i32
    return %c0_i32, %arg0 : i32, i32
  }
  func.func @transform_3(%arg0: i32, %arg1: memref<128xi32, #tpu.memory_space<smem>>, %arg2: memref<128xi32, #tpu.memory_space<smem>>) -> (i32, i32) {
    %c0_i32 = arith.constant 0 : i32
    %c0_i32_0 = arith.constant 0 : i32
    return %c0_i32, %arg0 : i32, i32
  }
  func.func @transform_4(%arg0: i32, %arg1: memref<128xi32, #tpu.memory_space<smem>>, %arg2: memref<128xi32, #tpu.memory_space<smem>>) -> (i32, i32) {
    %c0_i32 = arith.constant 0 : i32
    %c0_i32_0 = arith.constant 0 : i32
    return %c0_i32, %arg0 : i32, i32
  }
  func.func @transform_5(%arg0: i32, %arg1: memref<128xi32, #tpu.memory_space<smem>>, %arg2: memref<128xi32, #tpu.memory_space<smem>>) -> (i32, i32) {
    %c0_i32 = arith.constant 0 : i32
    %c0_i32_0 = arith.constant 0 : i32
    return %c0_i32, %arg0 : i32, i32
  }
}

</mosaic_0001>

<llo_original>
// kernel: tpu_custom_call.1
$region0: #{tpu_custom_call.1}
  #allocation0 [shape = 'u32[]', space=smem, size = 0x4, offset = 0x4, fixed_abs, tag = 'smem constant byte address 0x4 - core index']
  #allocation1 [shape = 'u32[144,128]{1,0:T(1,128)}', space=vmem, size = 0x12000, scoped, tag = 'internal scratch']
  #allocation2 [shape = 'f32[128,1,128]{2,1,0:T(1,128)}', space=vmem, size = 0x10000, scoped, tag = 'scratch operand']
  #allocation3 [shape = 'f32[128,1,128]{2,1,0:T(1,128)}', space=vmem, size = 0x10000, scoped, tag = 'scratch operand']
  #allocation4 [shape = 's32[1]{0}', space=sflag, size = 0x4, scoped, tag = 'scratch operand']
  #allocation5 [shape = 's32[1]{0}', space=sflag, size = 0x4, scoped, tag = 'scoped memory for tpu_custom_call.1']
  #allocation6 [shape = 'u8[512]{0}', space=smem, size = 0x200, scoped, tag = 'prefetched SMEM operand 0']
  #allocation7 [shape = 'u8[512]{0}', space=smem, size = 0x200, scoped, tag = 'prefetched SMEM operand 1']
  #allocation12 [shape = 's32[]', space=sflag, size = 0x4, offset = 0, fixed_abs, tag = 'sflag constant byte address 0x0 - dummy sync flag']
  #allocation13 [shape = 's32[]', space=sflag, size = 0x4, offset = 0, fixed_abs, tag = 'sflag constant byte address 0x0 - dummy sync flag']
  #allocation14 [shape = 'u32[]', space=smem, size = 0x4, offset = 0x44, fixed_abs, tag = 'smem constant byte address 0x44 - assertion arg 0']
  #allocation15 [shape = 'u32[]', space=smem, size = 0x4, offset = 0x48, fixed_abs, tag = 'smem constant byte address 0x48 - assertion arg 1']
  #allocation16 [shape = 's32[]', space=sflag, size = 0x4, offset = 0, fixed_abs, tag = 'sflag constant byte address 0x0 - dummy sync flag']
  #allocation17 [shape = 's32[]', space=sflag, size = 0x4, offset = 0, fixed_abs, tag = 'sflag constant byte address 0x0 - dummy sync flag']
  %s0 = inlined_call_operand.hbm [shape: s32[128], index: 0, kind: input, shape index: {}]
  %s1 = inlined_call_operand.vmem [shape: s32[128], index: 1, kind: input, shape index: {}]
  %s2 = inlined_call_operand.hbm [shape: f32[32,1,128], index: 2, kind: input, shape index: {}]
  %s3 = inlined_call_operand.vmem [shape: f32[1,128], index: 3, kind: input, shape index: {}]
  %s4 = inlined_call_operand.vmem [shape: f32[1,128], index: 4, kind: input, shape index: {}]
  %s5 = inlined_call_operand.vmem [shape: f32[1,128], index: 5, kind: input, shape index: {}]
  %s6 = inlined_call_operand.hbm [shape: f32[1,128], index: 6, kind: output, shape index: {0}]
  %s7 = inlined_call_operand.hbm [shape: f32[1,128], index: 7, kind: output, shape index: {1}]
  %8 = xla_tuple %s6, %s7
  %s9 = sld [smem:[#allocation0]]
  $region52: #{tpu_custom_call.1} parent=0
    _
  %s11 = ssub.s32 1, %s9
  %s12 = scalar_select 0, %s11, %s9
  %14 = dma.hbm_to_smem %s0, 16, [#allocation6], [#allocation5]
  %s15 = sshll.u32 %s1, 4
  %s16 = int_to_ptr.vmem [resolvable:$true] %s15
  %18 = dma.vmem_to_smem %s16, 16, [#allocation7], [#allocation5]
  %19 = dma.done [#allocation5], 32
  %20 = sfence
  $region1: #{tpu_custom_call.1} parent=0
    #allocation8 [shape = 'u8[512]{0}', space=vmem, size = 0x400, scoped, tag = 'output window, operand 0, single buffered']
    #allocation9 [shape = 's32[1]{0}', space=sflag, size = 0x4, scoped, tag = 'scoped memory for tpu_custom_call.1']
    #allocation10 [shape = 'u8[512]{0}', space=vmem, size = 0x400, scoped, tag = 'output window, operand 1, single buffered']
    #allocation11 [shape = 's32[1]{0}', space=sflag, size = 0x4, scoped, tag = 'scoped memory for tpu_custom_call.1']
    %21 = vsyncpa [#allocation9], 0
    %22 = vsyncpa [#allocation11], 0
    // Predicated region
    $region2: #{tpu_custom_call.1} parent=1 // pred_check
      _
    $region3: #{tpu_custom_call.1} parent=1 // pred_check_branch
      %24 = sbr.rel (0) target = $region5
    $region4: #{tpu_custom_call.1} parent=1 // pred_region
      _
    $region5: #{tpu_custom_call.1} parent=1 // pred_fallthru
      _
    // Predicated region
    $region6: #{tpu_custom_call.1} parent=1 // pred_check
      _
    $region7: #{tpu_custom_call.1} parent=1 // pred_check_branch
      %26 = sbr.rel (0) target = $region9
    $region8: #{tpu_custom_call.1} parent=1 // pred_region
      _
    $region9: #{tpu_custom_call.1} parent=1 // pred_fallthru
      _
    // Predicated region
    $region10: #{tpu_custom_call.1} parent=1 // pred_check
      _
    $region11: #{tpu_custom_call.1} parent=1 // pred_check_branch
      %28 = sbr.rel (0) target = $region13
    $region12: #{tpu_custom_call.1} parent=1 // pred_region
      _
    $region13: #{tpu_custom_call.1} parent=1 // pred_fallthru
      _
    %s29 = smul.u32 0, 128
    loop: start=0, step=1, limit=128
    $region14: #{tpu_custom_call.1} parent=1 // loop_pre_header
      _
    $region15: #{tpu_custom_call.1} parent=1 // loop_header
      %s31 = sphi 0, %s35
      %p32 = scmp.ge.s32.totalorder %s31, 128
    $region16: #{tpu_custom_call.1} parent=1 // loop_header_branch
      %34 = sbr.rel (%p32) target = $region20
    $region17: #{tpu_custom_call.1} parent=1 // loop_body
      %s36 = sadd.s32 %s29, %s31
      %s37 = sld [smem:[#allocation6 + %s36]]
      %s38 = smul.addr %s37, 16
      %s39 = scalar_lea.hbm %s2, %s38
      %s40 = scalar_lea.vmem [#allocation2], %s31
      // Predicated region
      $region21: #{tpu_custom_call.1} parent=17 // pred_check
        _
      $region22: #{tpu_custom_call.1} parent=17 // pred_check_branch
        %42 = sbr.rel target = $region24
      $region23: #{tpu_custom_call.1} parent=17 // pred_region
        %43 = sst [smem:[#allocation14]] [#allocation13]
        %44 = sst [smem:[#allocation15]] [#allocation12]
      $region24: #{tpu_custom_call.1} parent=17 // pred_fallthru
        _
      %46 = shalt.err (0)
      %s48 = sshll.u32 %s40, 4
      %s49 = int_to_ptr.vmem [resolvable:$true] %s48
      %51 = dma.hbm_to_vmem [thread:$0]  %s39, 16, %s49, [#allocation4]
      %s52 = sld [smem:[#allocation7 + %s36]]
      %s53 = smul.addr %s52, 16
      %s54 = scalar_lea.hbm %s2, %s53
      %s55 = scalar_lea.vmem [#allocation3], %s31
      // Predicated region
      $region25: #{tpu_custom_call.1} parent=17 // pred_check
        _
      $region26: #{tpu_custom_call.1} parent=17 // pred_check_branch
        %57 = sbr.rel target = $region28
      $region27: #{tpu_custom_call.1} parent=17 // pred_region
        %58 = sst [smem:[#allocation14]] [#allocation17]
        %59 = sst [smem:[#allocation15]] [#allocation16]
      $region28: #{tpu_custom_call.1} parent=17 // pred_fallthru
        _
      %61 = shalt.err (0)
      %s63 = sshll.u32 %s55, 4
      %s64 = int_to_ptr.vmem [resolvable:$true] %s63
      %66 = dma.hbm_to_vmem [thread:$0]  %s54, 16, %s64, [#allocation4]
    $region18: #{tpu_custom_call.1} parent=1 // loop_footer
      %s35 = sadd.s32 1, %s31
    $region19: #{tpu_custom_call.1} parent=1 // loop_footer_branch
      %30 = sbr.rel target = $region15
    $region20: #{tpu_custom_call.1} parent=1 // loop_exit
      _
    loop: start=0, step=1, limit=256
    $region29: #{tpu_custom_call.1} parent=1 // loop_pre_header
      _
    $region30: #{tpu_custom_call.1} parent=1 // loop_header
      %s68 = sphi 0, %s72
      %p69 = scmp.ge.s32.totalorder %s68, 256
    $region31: #{tpu_custom_call.1} parent=1 // loop_header_branch
      %71 = sbr.rel (%p69) target = $region35
    $region32: #{tpu_custom_call.1} parent=1 // loop_body
      %s73 = smul.u32 1, 1
      %s74 = sshll.u32 %s73, 4
      %75 = dma.done [#allocation4], %s74
    $region33: #{tpu_custom_call.1} parent=1 // loop_footer
      %s72 = sadd.s32 1, %s68
    $region34: #{tpu_custom_call.1} parent=1 // loop_footer_branch
      %67 = sbr.rel target = $region30
    $region35: #{tpu_custom_call.1} parent=1 // loop_exit
      _
    %v76 = vld [vmem:[#allocation2] sm:$0x1]
    %v77 = vld [vmem:[#allocation2 + $0x1] sm:$0x1]
    %v78 = vld [vmem:[#allocation2 + $0x2] sm:$0x1]
    %v79 = vld [vmem:[#allocation2 + $0x3] sm:$0x1]
    %v80 = vld [vmem:[#allocation2 + $0x4] sm:$0x1]
    %v81 = vld [vmem:[#allocation2 + $0x5] sm:$0x1]
    %v82 = vld [vmem:[#allocation2 + $0x6] sm:$0x1]
    %v83 = vld [vmem:[#allocation2 + $0x7] sm:$0x1]
    %v84 = vld [vmem:[#allocation2 + $0x8] sm:$0x1]
    %v85 = vld [vmem:[#allocation2 + $0x9] sm:$0x1]
    %v86 = vld [vmem:[#allocation2 + $0xa] sm:$0x1]
    %v87 = vld [vmem:[#allocation2 + $0xb] sm:$0x1]
    %v88 = vld [vmem:[#allocation2 + $0xc] sm:$0x1]
    %v89 = vld [vmem:[#allocation2 + $0xd] sm:$0x1]
    %v90 = vld [vmem:[#allocation2 + $0xe] sm:$0x1]
    %v91 = vld [vmem:[#allocation2 + $0xf] sm:$0x1]
    %v92 = vld [vmem:[#allocation2 + $0x10] sm:$0x1]
    %v93 = vld [vmem:[#allocation2 + $0x11] sm:$0x1]
    %v94 = vld [vmem:[#allocation2 + $0x12] sm:$0x1]
    %v95 = vld [vmem:[#allocation2 + $0x13] sm:$0x1]
    %v96 = vld [vmem:[#allocation2 + $0x14] sm:$0x1]
    %v97 = vld [vmem:[#allocation2 + $0x15] sm:$0x1]
    %v98 = vld [vmem:[#allocation2 + $0x16] sm:$0x1]
    %v99 = vld [vmem:[#allocation2 + $0x17] sm:$0x1]
    %v100 = vld [vmem:[#allocation2 + $0x18] sm:$0x1]
    %v101 = vld [vmem:[#allocation2 + $0x19] sm:$0x1]
    %v102 = vld [vmem:[#allocation2 + $0x1a] sm:$0x1]
    %v103 = vld [vmem:[#allocation2 + $0x1b] sm:$0x1]
    %v104 = vld [vmem:[#allocation2 + $0x1c] sm:$0x1]
    %v105 = vld [vmem:[#allocation2 + $0x1d] sm:$0x1]
    %v106 = vld [vmem:[#allocation2 + $0x1e] sm:$0x1]
    %v107 = vld [vmem:[#allocation2 + $0x1f] sm:$0x1]
    %v108 = vld [vmem:[#allocation2 + $0x20] sm:$0x1]
    %v109 = vld [vmem:[#allocation2 + $0x21] sm:$0x1]
    %v110 = vld [vmem:[#allocation2 + $0x22] sm:$0x1]
    %v111 = vld [vmem:[#allocation2 + $0x23] sm:$0x1]
    %v112 = vld [vmem:[#allocation2 + $0x24] sm:$0x1]
    %v113 = vld [vmem:[#allocation2 + $0x25] sm:$0x1]
    %v114 = vld [vmem:[#allocation2 + $0x26] sm:$0x1]
    %v115 = vld [vmem:[#allocation2 + $0x27] sm:$0x1]
    %v116 = vld [vmem:[#allocation2 + $0x28] sm:$0x1]
    %v117 = vld [vmem:[#allocation2 + $0x29] sm:$0x1]
    %v118 = vld [vmem:[#allocation2 + $0x2a] sm:$0x1]
    %v119 = vld [vmem:[#allocation2 + $0x2b] sm:$0x1]
    %v120 = vld [vmem:[#allocation2 + $0x2c] sm:$0x1]
    %v121 = vld [vmem:[#allocation2 + $0x2d] sm:$0x1]
    %v122 = vld [vmem:[#allocation2 + $0x2e] sm:$0x1]
    %v123 = vld [vmem:[#allocation2 + $0x2f] sm:$0x1]
    %v124 = vld [vmem:[#allocation2 + $0x30] sm:$0x1]
    %v125 = vld [vmem:[#allocation2 + $0x31] sm:$0x1]
    %v126 = vld [vmem:[#allocation2 + $0x32] sm:$0x1]
    %v127 = vld [vmem:[#allocation2 + $0x33] sm:$0x1]
    %v128 = vld [vmem:[#allocation2 + $0x34] sm:$0x1]
    %v129 = vld [vmem:[#allocation2 + $0x35] sm:$0x1]
    %v130 = vld [vmem:[#allocation2 + $0x36] sm:$0x1]
    %v131 = vld [vmem:[#allocation2 + $0x37] sm:$0x1]
    %v132 = vld [vmem:[#allocation2 + $0x38] sm:$0x1]
    %v133 = vld [vmem:[#allocation2 + $0x39] sm:$0x1]
    %v134 = vld [vmem:[#allocation2 + $0x3a] sm:$0x1]
    %v135 = vld [vmem:[#allocation2 + $0x3b] sm:$0x1]
    %v136 = vld [vmem:[#allocation2 + $0x3c] sm:$0x1]
    %v137 = vld [vmem:[#allocation2 + $0x3d] sm:$0x1]
    %v138 = vld [vmem:[#allocation2 + $0x3e] sm:$0x1]
    %v139 = vld [vmem:[#allocation2 + $0x3f] sm:$0x1]
    %v140 = vld [vmem:[#allocation2 + $0x40] sm:$0x1]
    %v141 = vld [vmem:[#allocation2 + $0x41] sm:$0x1]
    %v142 = vld [vmem:[#allocation2 + $0x42] sm:$0x1]
    %v143 = vld [vmem:[#allocation2 + $0x43] sm:$0x1]
    %v144 = vld [vmem:[#allocation2 + $0x44] sm:$0x1]
    %v145 = vld [vmem:[#allocation2 + $0x45] sm:$0x1]
    %v146 = vld [vmem:[#allocation2 + $0x46] sm:$0x1]
    %v147 = vld [vmem:[#allocation2 + $0x47] sm:$0x1]
    %v148 = vld [vmem:[#allocation2 + $0x48] sm:$0x1]
    %v149 = vld [vmem:[#allocation2 + $0x49] sm:$0x1]
    %v150 = vld [vmem:[#allocation2 + $0x4a] sm:$0x1]
    %v151 = vld [vmem:[#allocation2 + $0x4b] sm:$0x1]
    %v152 = vld [vmem:[#allocation2 + $0x4c] sm:$0x1]
    %v153 = vld [vmem:[#allocation2 + $0x4d] sm:$0x1]
    %v154 = vld [vmem:[#allocation2 + $0x4e] sm:$0x1]
    %v155 = vld [vmem:[#allocation2 + $0x4f] sm:$0x1]
    %v156 = vld [vmem:[#allocation2 + $0x50] sm:$0x1]
    %v157 = vld [vmem:[#allocation2 + $0x51] sm:$0x1]
    %v158 = vld [vmem:[#allocation2 + $0x52] sm:$0x1]
    %v159 = vld [vmem:[#allocation2 + $0x53] sm:$0x1]
    %v160 = vld [vmem:[#allocation2 + $0x54] sm:$0x1]
    %v161 = vld [vmem:[#allocation2 + $0x55] sm:$0x1]
    %v162 = vld [vmem:[#allocation2 + $0x56] sm:$0x1]
    %v163 = vld [vmem:[#allocation2 + $0x57] sm:$0x1]
    %v164 = vld [vmem:[#allocation2 + $0x58] sm:$0x1]
    %v165 = vld [vmem:[#allocation2 + $0x59] sm:$0x1]
    %v166 = vld [vmem:[#allocation2 + $0x5a] sm:$0x1]
    %v167 = vld [vmem:[#allocation2 + $0x5b] sm:$0x1]
    %v168 = vld [vmem:[#allocation2 + $0x5c] sm:$0x1]
    %v169 = vld [vmem:[#allocation2 + $0x5d] sm:$0x1]
    %v170 = vld [vmem:[#allocation2 + $0x5e] sm:$0x1]
    %v171 = vld [vmem:[#allocation2 + $0x5f] sm:$0x1]
    %v172 = vld [vmem:[#allocation2 + $0x60] sm:$0x1]
    %v173 = vld [vmem:[#allocation2 + $0x61] sm:$0x1]
    %v174 = vld [vmem:[#allocation2 + $0x62] sm:$0x1]
    %v175 = vld [vmem:[#allocation2 + $0x63] sm:$0x1]
    %v176 = vld [vmem:[#allocation2 + $0x64] sm:$0x1]
    %v177 = vld [vmem:[#allocation2 + $0x65] sm:$0x1]
    %v178 = vld [vmem:[#allocation2 + $0x66] sm:$0x1]
    %v179 = vld [vmem:[#allocation2 + $0x67] sm:$0x1]
    %v180 = vld [vmem:[#allocation2 + $0x68] sm:$0x1]
    %v181 = vld [vmem:[#allocation2 + $0x69] sm:$0x1]
    %v182 = vld [vmem:[#allocation2 + $0x6a] sm:$0x1]
    %v183 = vld [vmem:[#allocation2 + $0x6b] sm:$0x1]
    %v184 = vld [vmem:[#allocation2 + $0x6c] sm:$0x1]
    %v185 = vld [vmem:[#allocation2 + $0x6d] sm:$0x1]
    %v186 = vld [vmem:[#allocation2 + $0x6e] sm:$0x1]
    %v187 = vld [vmem:[#allocation2 + $0x6f] sm:$0x1]
    %v188 = vld [vmem:[#allocation2 + $0x70] sm:$0x1]
    %v189 = vld [vmem:[#allocation2 + $0x71] sm:$0x1]
    %v190 = vld [vmem:[#allocation2 + $0x72] sm:$0x1]
    %v191 = vld [vmem:[#allocation2 + $0x73] sm:$0x1]
    %v192 = vld [vmem:[#allocation2 + $0x74] sm:$0x1]
    %v193 = vld [vmem:[#allocation2 + $0x75] sm:$0x1]
    %v194 = vld [vmem:[#allocation2 + $0x76] sm:$0x1]
    %v195 = vld [vmem:[#allocation2 + $0x77] sm:$0x1]
    %v196 = vld [vmem:[#allocation2 + $0x78] sm:$0x1]
    %v197 = vld [vmem:[#allocation2 + $0x79] sm:$0x1]
    %v198 = vld [vmem:[#allocation2 + $0x7a] sm:$0x1]
    %v199 = vld [vmem:[#allocation2 + $0x7b] sm:$0x1]
    %v200 = vld [vmem:[#allocation2 + $0x7c] sm:$0x1]
    %v201 = vld [vmem:[#allocation2 + $0x7d] sm:$0x1]
    %v202 = vld [vmem:[#allocation2 + $0x7e] sm:$0x1]
    %v203 = vld [vmem:[#allocation2 + $0x7f] sm:$0x1]
    %v204 = vld [vmem:[#allocation3] sm:$0x1]
    %v205 = vld [vmem:[#allocation3 + $0x1] sm:$0x1]
    %v206 = vld [vmem:[#allocation3 + $0x2] sm:$0x1]
    %v207 = vld [vmem:[#allocation3 + $0x3] sm:$0x1]
    %v208 = vld [vmem:[#allocation3 + $0x4] sm:$0x1]
    %v209 = vld [vmem:[#allocation3 + $0x5] sm:$0x1]
    %v210 = vld [vmem:[#allocation3 + $0x6] sm:$0x1]
    %v211 = vld [vmem:[#allocation3 + $0x7] sm:$0x1]
    %v212 = vld [vmem:[#allocation3 + $0x8] sm:$0x1]
    %v213 = vld [vmem:[#allocation3 + $0x9] sm:$0x1]
    %v214 = vld [vmem:[#allocation3 + $0xa] sm:$0x1]
    %v215 = vld [vmem:[#allocation3 + $0xb] sm:$0x1]
    %v216 = vld [vmem:[#allocation3 + $0xc] sm:$0x1]
    %v217 = vld [vmem:[#allocation3 + $0xd] sm:$0x1]
    %v218 = vld [vmem:[#allocation3 + $0xe] sm:$0x1]
    %v219 = vld [vmem:[#allocation3 + $0xf] sm:$0x1]
    %v220 = vld [vmem:[#allocation3 + $0x10] sm:$0x1]
    %v221 = vld [vmem:[#allocation3 + $0x11] sm:$0x1]
    %v222 = vld [vmem:[#allocation3 + $0x12] sm:$0x1]
    %v223 = vld [vmem:[#allocation3 + $0x13] sm:$0x1]
    %v224 = vld [vmem:[#allocation3 + $0x14] sm:$0x1]
    %v225 = vld [vmem:[#allocation3 + $0x15] sm:$0x1]
    %v226 = vld [vmem:[#allocation3 + $0x16] sm:$0x1]
    %v227 = vld [vmem:[#allocation3 + $0x17] sm:$0x1]
    %v228 = vld [vmem:[#allocation3 + $0x18] sm:$0x1]
    %v229 = vld [vmem:[#allocation3 + $0x19] sm:$0x1]
    %v230 = vld [vmem:[#allocation3 + $0x1a] sm:$0x1]
    %v231 = vld [vmem:[#allocation3 + $0x1b] sm:$0x1]
    %v232 = vld [vmem:[#allocation3 + $0x1c] sm:$0x1]
    %v233 = vld [vmem:[#allocation3 + $0x1d] sm:$0x1]
    %v234 = vld [vmem:[#allocation3 + $0x1e] sm:$0x1]
    %v235 = vld [vmem:[#allocation3 + $0x1f] sm:$0x1]
    %v236 = vld [vmem:[#allocation3 + $0x20] sm:$0x1]
    %v237 = vld [vmem:[#allocation3 + $0x21] sm:$0x1]
    %v238 = vld [vmem:[#allocation3 + $0x22] sm:$0x1]
    %v239 = vld [vmem:[#allocation3 + $0x23] sm:$0x1]
    %v240 = vld [vmem:[#allocation3 + $0x24] sm:$0x1]
    %v241 = vld [vmem:[#allocation3 + $0x25] sm:$0x1]
    %v242 = vld [vmem:[#allocation3 + $0x26] sm:$0x1]
    %v243 = vld [vmem:[#allocation3 + $0x27] sm:$0x1]
    %v244 = vld [vmem:[#allocation3 + $0x28] sm:$0x1]
    %v245 = vld [vmem:[#allocation3 + $0x29] sm:$0x1]
    %v246 = vld [vmem:[#allocation3 + $0x2a] sm:$0x1]
    %v247 = vld [vmem:[#allocation3 + $0x2b] sm:$0x1]
    %v248 = vld [vmem:[#allocation3 + $0x2c] sm:$0x1]
    %v249 = vld [vmem:[#allocation3 + $0x2d] sm:$0x1]
    %v250 = vld [vmem:[#allocation3 + $0x2e] sm:$0x1]
    %v251 = vld [vmem:[#allocation3 + $0x2f] sm:$0x1]
    %v252 = vld [vmem:[#allocation3 + $0x30] sm:$0x1]
    %v253 = vld [vmem:[#allocation3 + $0x31] sm:$0x1]
    %v254 = vld [vmem:[#allocation3 + $0x32] sm:$0x1]
    %v255 = vld [vmem:[#allocation3 + $0x33] sm:$0x1]
    %v256 = vld [vmem:[#allocation3 + $0x34] sm:$0x1]
    %v257 = vld [vmem:[#allocation3 + $0x35] sm:$0x1]
    %v258 = vld [vmem:[#allocation3 + $0x36] sm:$0x1]
    %v259 = vld [vmem:[#allocation3 + $0x37] sm:$0x1]
    %v260 = vld [vmem:[#allocation3 + $0x38] sm:$0x1]
    %v261 = vld [vmem:[#allocation3 + $0x39] sm:$0x1]
    %v262 = vld [vmem:[#allocation3 + $0x3a] sm:$0x1]
    %v263 = vld [vmem:[#allocation3 + $0x3b] sm:$0x1]
    %v264 = vld [vmem:[#allocation3 + $0x3c] sm:$0x1]
    %v265 = vld [vmem:[#allocation3 + $0x3d] sm:$0x1]
    %v266 = vld [vmem:[#allocation3 + $0x3e] sm:$0x1]
    %v267 = vld [vmem:[#allocation3 + $0x3f] sm:$0x1]
    %v268 = vld [vmem:[#allocation3 + $0x40] sm:$0x1]
    %v269 = vld [vmem:[#allocation3 + $0x41] sm:$0x1]
    %v270 = vld [vmem:[#allocation3 + $0x42] sm:$0x1]
    %v271 = vld [vmem:[#allocation3 + $0x43] sm:$0x1]
    %v272 = vld [vmem:[#allocation3 + $0x44] sm:$0x1]
    %v273 = vld [vmem:[#allocation3 + $0x45] sm:$0x1]
    %v274 = vld [vmem:[#allocation3 + $0x46] sm:$0x1]
    %v275 = vld [vmem:[#allocation3 + $0x47] sm:$0x1]
    %v276 = vld [vmem:[#allocation3 + $0x48] sm:$0x1]
    %v277 = vld [vmem:[#allocation3 + $0x49] sm:$0x1]
    %v278 = vld [vmem:[#allocation3 + $0x4a] sm:$0x1]
    %v279 = vld [vmem:[#allocation3 + $0x4b] sm:$0x1]
    %v280 = vld [vmem:[#allocation3 + $0x4c] sm:$0x1]
    %v281 = vld [vmem:[#allocation3 + $0x4d] sm:$0x1]
    %v282 = vld [vmem:[#allocation3 + $0x4e] sm:$0x1]
    %v283 = vld [vmem:[#allocation3 + $0x4f] sm:$0x1]
    %v284 = vld [vmem:[#allocation3 + $0x50] sm:$0x1]
    %v285 = vld [vmem:[#allocation3 + $0x51] sm:$0x1]
    %v286 = vld [vmem:[#allocation3 + $0x52] sm:$0x1]
    %v287 = vld [vmem:[#allocation3 + $0x53] sm:$0x1]
    %v288 = vld [vmem:[#allocation3 + $0x54] sm:$0x1]
    %v289 = vld [vmem:[#allocation3 + $0x55] sm:$0x1]
    %v290 = vld [vmem:[#allocation3 + $0x56] sm:$0x1]
    %v291 = vld [vmem:[#allocation3 + $0x57] sm:$0x1]
    %v292 = vld [vmem:[#allocation3 + $0x58] sm:$0x1]
    %v293 = vld [vmem:[#allocation3 + $0x59] sm:$0x1]
    %v294 = vld [vmem:[#allocation3 + $0x5a] sm:$0x1]
    %v295 = vld [vmem:[#allocation3 + $0x5b] sm:$0x1]
    %v296 = vld [vmem:[#allocation3 + $0x5c] sm:$0x1]
    %v297 = vld [vmem:[#allocation3 + $0x5d] sm:$0x1]
    %v298 = vld [vmem:[#allocation3 + $0x5e] sm:$0x1]
    %v299 = vld [vmem:[#allocation3 + $0x5f] sm:$0x1]
    %v300 = vld [vmem:[#allocation3 + $0x60] sm:$0x1]
    %v301 = vld [vmem:[#allocation3 + $0x61] sm:$0x1]
    %v302 = vld [vmem:[#allocation3 + $0x62] sm:$0x1]
    %v303 = vld [vmem:[#allocation3 + $0x63] sm:$0x1]
    %v304 = vld [vmem:[#allocation3 + $0x64] sm:$0x1]
    %v305 = vld [vmem:[#allocation3 + $0x65] sm:$0x1]
    %v306 = vld [vmem:[#allocation3 + $0x66] sm:$0x1]
    %v307 = vld [vmem:[#allocation3 + $0x67] sm:$0x1]
    %v308 = vld [vmem:[#allocation3 + $0x68] sm:$0x1]
    %v309 = vld [vmem:[#allocation3 + $0x69] sm:$0x1]
    %v310 = vld [vmem:[#allocation3 + $0x6a] sm:$0x1]
    %v311 = vld [vmem:[#allocation3 + $0x6b] sm:$0x1]
    %v312 = vld [vmem:[#allocation3 + $0x6c] sm:$0x1]
    %v313 = vld [vmem:[#allocation3 + $0x6d] sm:$0x1]
    %v314 = vld [vmem:[#allocation3 + $0x6e] sm:$0x1]
    %v315 = vld [vmem:[#allocation3 + $0x6f] sm:$0x1]
    %v316 = vld [vmem:[#allocation3 + $0x70] sm:$0x1]
    %v317 = vld [vmem:[#allocation3 + $0x71] sm:$0x1]
    %v318 = vld [vmem:[#allocation3 + $0x72] sm:$0x1]
    %v319 = vld [vmem:[#allocation3 + $0x73] sm:$0x1]
    %v320 = vld [vmem:[#allocation3 + $0x74] sm:$0x1]
    %v321 = vld [vmem:[#allocation3 + $0x75] sm:$0x1]
    %v322 = vld [vmem:[#allocation3 + $0x76] sm:$0x1]
    %v323 = vld [vmem:[#allocation3 + $0x77] sm:$0x1]
    %v324 = vld [vmem:[#allocation3 + $0x78] sm:$0x1]
    %v325 = vld [vmem:[#allocation3 + $0x79] sm:$0x1]
    %v326 = vld [vmem:[#allocation3 + $0x7a] sm:$0x1]
    %v327 = vld [vmem:[#allocation3 + $0x7b] sm:$0x1]
    %v328 = vld [vmem:[#allocation3 + $0x7c] sm:$0x1]
    %v329 = vld [vmem:[#allocation3 + $0x7d] sm:$0x1]
    %v330 = vld [vmem:[#allocation3 + $0x7e] sm:$0x1]
    %v331 = vld [vmem:[#allocation3 + $0x7f] sm:$0x1]
    %v332 = vmul.f32 %v76, %v204
    %v333 = vmul.f32 %v77, %v205
    %v334 = vmul.f32 %v78, %v206
    %v335 = vmul.f32 %v79, %v207
    %v336 = vmul.f32 %v80, %v208
    %v337 = vmul.f32 %v81, %v209
    %v338 = vmul.f32 %v82, %v210
    %v339 = vmul.f32 %v83, %v211
    %v340 = vmul.f32 %v84, %v212
    %v341 = vmul.f32 %v85, %v213
    %v342 = vmul.f32 %v86, %v214
    %v343 = vmul.f32 %v87, %v215
    %v344 = vmul.f32 %v88, %v216
    %v345 = vmul.f32 %v89, %v217
    %v346 = vmul.f32 %v90, %v218
    %v347 = vmul.f32 %v91, %v219
    %v348 = vmul.f32 %v92, %v220
    %v349 = vmul.f32 %v93, %v221
    %v350 = vmul.f32 %v94, %v222
    %v351 = vmul.f32 %v95, %v223
    %v352 = vmul.f32 %v96, %v224
    %v353 = vmul.f32 %v97, %v225
    %v354 = vmul.f32 %v98, %v226
    %v355 = vmul.f32 %v99, %v227
    %v356 = vmul.f32 %v100, %v228
    %v357 = vmul.f32 %v101, %v229
    %v358 = vmul.f32 %v102, %v230
    %v359 = vmul.f32 %v103, %v231
    %v360 = vmul.f32 %v104, %v232
    %v361 = vmul.f32 %v105, %v233
    %v362 = vmul.f32 %v106, %v234
    %v363 = vmul.f32 %v107, %v235
    %v364 = vmul.f32 %v108, %v236
    %v365 = vmul.f32 %v109, %v237
    %v366 = vmul.f32 %v110, %v238
    %v367 = vmul.f32 %v111, %v239
    %v368 = vmul.f32 %v112, %v240
    %v369 = vmul.f32 %v113, %v241
    %v370 = vmul.f32 %v114, %v242
    %v371 = vmul.f32 %v115, %v243
    %v372 = vmul.f32 %v116, %v244
    %v373 = vmul.f32 %v117, %v245
    %v374 = vmul.f32 %v118, %v246
    %v375 = vmul.f32 %v119, %v247
    %v376 = vmul.f32 %v120, %v248
    %v377 = vmul.f32 %v121, %v249
    %v378 = vmul.f32 %v122, %v250
    %v379 = vmul.f32 %v123, %v251
    %v380 = vmul.f32 %v124, %v252
    %v381 = vmul.f32 %v125, %v253
    %v382 = vmul.f32 %v126, %v254
    %v383 = vmul.f32 %v127, %v255
    %v384 = vmul.f32 %v128, %v256
    %v385 = vmul.f32 %v129, %v257
    %v386 = vmul.f32 %v130, %v258
    %v387 = vmul.f32 %v131, %v259
    %v388 = vmul.f32 %v132, %v260
    %v389 = vmul.f32 %v133, %v261
    %v390 = vmul.f32 %v134, %v262
    %v391 = vmul.f32 %v135, %v263
    %v392 = vmul.f32 %v136, %v264
    %v393 = vmul.f32 %v137, %v265
    %v394 = vmul.f32 %v138, %v266
    %v395 = vmul.f32 %v139, %v267
    %v396 = vmul.f32 %v140, %v268
    %v397 = vmul.f32 %v141, %v269
    %v398 = vmul.f32 %v142, %v270
    %v399 = vmul.f32 %v143, %v271
    %v400 = vmul.f32 %v144, %v272
    %v401 = vmul.f32 %v145, %v273
    %v402 = vmul.f32 %v146, %v274
    %v403 = vmul.f32 %v147, %v275
    %v404 = vmul.f32 %v148, %v276
    %v405 = vmul.f32 %v149, %v277
    %v406 = vmul.f32 %v150, %v278
    %v407 = vmul.f32 %v151, %v279
    %v408 = vmul.f32 %v152, %v280
    %v409 = vmul.f32 %v153, %v281
    %v410 = vmul.f32 %v154, %v282
    %v411 = vmul.f32 %v155, %v283
    %v412 = vmul.f32 %v156, %v284
    %v413 = vmul.f32 %v157, %v285
    %v414 = vmul.f32 %v158, %v286
    %v415 = vmul.f32 %v159, %v287
    %v416 = vmul.f32 %v160, %v288
    %v417 = vmul.f32 %v161, %v289
    %v418 = vmul.f32 %v162, %v290
    %v419 = vmul.f32 %v163, %v291
    %v420 = vmul.f32 %v164, %v292
    %v421 = vmul.f32 %v165, %v293
    %v422 = vmul.f32 %v166, %v294
    %v423 = vmul.f32 %v167, %v295
    %v424 = vmul.f32 %v168, %v296
    %v425 = vmul.f32 %v169, %v297
    %v426 = vmul.f32 %v170, %v298
    %v427 = vmul.f32 %v171, %v299
    %v428 = vmul.f32 %v172, %v300
    %v429 = vmul.f32 %v173, %v301
    %v430 = vmul.f32 %v174, %v302
    %v431 = vmul.f32 %v175, %v303
    %v432 = vmul.f32 %v176, %v304
    %v433 = vmul.f32 %v177, %v305
    %v434 = vmul.f32 %v178, %v306
    %v435 = vmul.f32 %v179, %v307
    %v436 = vmul.f32 %v180, %v308
    %v437 = vmul.f32 %v181, %v309
    %v438 = vmul.f32 %v182, %v310
    %v439 = vmul.f32 %v183, %v311
    %v440 = vmul.f32 %v184, %v312
    %v441 = vmul.f32 %v185, %v313
    %v442 = vmul.f32 %v186, %v314
    %v443 = vmul.f32 %v187, %v315
    %v444 = vmul.f32 %v188, %v316
    %v445 = vmul.f32 %v189, %v317
    %v446 = vmul.f32 %v190, %v318
    %v447 = vmul.f32 %v191, %v319
    %v448 = vmul.f32 %v192, %v320
    %v449 = vmul.f32 %v193, %v321
    %v450 = vmul.f32 %v194, %v322
    %v451 = vmul.f32 %v195, %v323
    %v452 = vmul.f32 %v196, %v324
    %v453 = vmul.f32 %v197, %v325
    %v454 = vmul.f32 %v198, %v326
    %v455 = vmul.f32 %v199, %v327
    %v456 = vmul.f32 %v200, %v328
    %v457 = vmul.f32 %v201, %v329
    %v458 = vmul.f32 %v202, %v330
    %v459 = vmul.f32 %v203, %v331
    %v588 = vcombine.low %v332, %v333
    %v589 = vcombine.low %v334, %v335
    %v590 = vcombine.low %v336, %v337
    %v591 = vcombine.low %v338, %v339
    %v593 = vunpack.c.l.s4 1966171168
    %v594 = vunpack.c.0.s8 %v593
    %v595 = vlaneseq
    %v596 = vshrl.u32 %v595, 7
    %v597 = vsub.s32 %v594, %v596
    %v598 = vrot.slane %v588, %v597
    %v600 = vunpack.c.l.s4 1966171168
    %v601 = vunpack.c.0.s8 %v600
    %v602 = vlaneseq
    %v603 = vshrl.u32 %v602, 7
    %v604 = vsub.s32 %v601, %v603
    %v605 = vrot.slane %v589, %v604
    %v607 = vunpack.c.l.s4 1966171168
    %v608 = vunpack.c.0.s8 %v607
    %v609 = vlaneseq
    %v610 = vshrl.u32 %v609, 7
    %v611 = vsub.s32 %v608, %v610
    %v612 = vrot.slane %v590, %v611
    %v614 = vunpack.c.l.s4 1966171168
    %v615 = vunpack.c.0.s8 %v614
    %v616 = vlaneseq
    %v617 = vshrl.u32 %v616, 7
    %v618 = vsub.s32 %v615, %v617
    %v619 = vrot.slane %v591, %v618
    %v620 = vcombine.low %v598, %v605
    %v621 = vcombine.low %v612, %v619
    %v623 = vunpack.c.l.s4 1966171168
    %v624 = vunpack.c.0.s8 %v623
    %v625 = vlaneseq
    %v626 = vshrl.u32 %v625, 7
    %v627 = vsub.s32 %v624, %v626
    %v628 = vrot.slane %v620, %v627
    %v630 = vunpack.c.l.s4 1966171168
    %v631 = vunpack.c.0.s8 %v630
    %v632 = vlaneseq
    %v633 = vshrl.u32 %v632, 7
    %v634 = vsub.s32 %v631, %v633
    %v635 = vrot.slane %v621, %v634
    %v636 = vcombine.low %v628, %v635
    %v637 = vcombine.low %v340, %v341
    %v638 = vcombine.low %v342, %v343
    %v639 = vcombine.low %v344, %v345
    %v640 = vcombine.low %v346, %v347
    %v642 = vunpack.c.l.s4 1966171168
    %v643 = vunpack.c.0.s8 %v642
    %v644 = vlaneseq
    %v645 = vshrl.u32 %v644, 7
    %v646 = vsub.s32 %v643, %v645
    %v647 = vrot.slane %v637, %v646
    %v649 = vunpack.c.l.s4 1966171168
    %v650 = vunpack.c.0.s8 %v649
    %v651 = vlaneseq
    %v652 = vshrl.u32 %v651, 7
    %v653 = vsub.s32 %v650, %v652
    %v654 = vrot.slane %v638, %v653
    %v656 = vunpack.c.l.s4 1966171168
    %v657 = vunpack.c.0.s8 %v656
    %v658 = vlaneseq
    %v659 = vshrl.u32 %v658, 7
    %v660 = vsub.s32 %v657, %v659
    %v661 = vrot.slane %v639, %v660
    %v663 = vunpack.c.l.s4 1966171168
    %v664 = vunpack.c.0.s8 %v663
    %v665 = vlaneseq
    %v666 = vshrl.u32 %v665, 7
    %v667 = vsub.s32 %v664, %v666
    %v668 = vrot.slane %v640, %v667
    %v669 = vcombine.low %v647, %v654
    %v670 = vcombine.low %v661, %v668
    %v672 = vunpack.c.l.s4 1966171168
    %v673 = vunpack.c.0.s8 %v672
    %v674 = vlaneseq
    %v675 = vshrl.u32 %v674, 7
    %v676 = vsub.s32 %v673, %v675
    %v677 = vrot.slane %v669, %v676
    %v679 = vunpack.c.l.s4 1966171168
    %v680 = vunpack.c.0.s8 %v679
    %v681 = vlaneseq
    %v682 = vshrl.u32 %v681, 7
    %v683 = vsub.s32 %v680, %v682
    %v684 = vrot.slane %v670, %v683
    %v685 = vcombine.low %v677, %v684
    %v686 = vcombine.low %v348, %v349
    %v687 = vcombine.low %v350, %v351
    %v688 = vcombine.low %v352, %v353
    %v689 = vcombine.low %v354, %v355
    %v691 = vunpack.c.l.s4 1966171168
    %v692 = vunpack.c.0.s8 %v691
    %v693 = vlaneseq
    %v694 = vshrl.u32 %v693, 7
    %v695 = vsub.s32 %v692, %v694
    %v696 = vrot.slane %v686, %v695
    %v698 = vunpack.c.l.s4 1966171168
    %v699 = vunpack.c.0.s8 %v698
    %v700 = vlaneseq
    %v701 = vshrl.u32 %v700, 7
    %v702 = vsub.s32 %v699, %v701
    %v703 = vrot.slane %v687, %v702
    %v705 = vunpack.c.l.s4 1966171168
    %v706 = vunpack.c.0.s8 %v705
    %v707 = vlaneseq
    %v708 = vshrl.u32 %v707, 7
    %v709 = vsub.s32 %v706, %v708
    %v710 = vrot.slane %v688, %v709
    %v712 = vunpack.c.l.s4 1966171168
    %v713 = vunpack.c.0.s8 %v712
    %v714 = vlaneseq
    %v715 = vshrl.u32 %v714, 7
    %v716 = vsub.s32 %v713, %v715
    %v717 = vrot.slane %v689, %v716
    %v718 = vcombine.low %v696, %v703
    %v719 = vcombine.low %v710, %v717
    %v721 = vunpack.c.l.s4 1966171168
    %v722 = vunpack.c.0.s8 %v721
    %v723 = vlaneseq
    %v724 = vshrl.u32 %v723, 7
    %v725 = vsub.s32 %v722, %v724
    %v726 = vrot.slane %v718, %v725
    %v728 = vunpack.c.l.s4 1966171168
    %v729 = vunpack.c.0.s8 %v728
    %v730 = vlaneseq
    %v731 = vshrl.u32 %v730, 7
    %v732 = vsub.s32 %v729, %v731
    %v733 = vrot.slane %v719, %v732
    %v734 = vcombine.low %v726, %v733
    %v735 = vcombine.low %v356, %v357
    %v736 = vcombine.low %v358, %v359
    %v737 = vcombine.low %v360, %v361
    %v738 = vcombine.low %v362, %v363
    %v740 = vunpack.c.l.s4 1966171168
    %v741 = vunpack.c.0.s8 %v740
    %v742 = vlaneseq
    %v743 = vshrl.u32 %v742, 7
    %v744 = vsub.s32 %v741, %v743
    %v745 = vrot.slane %v735, %v744
    %v747 = vunpack.c.l.s4 1966171168
    %v748 = vunpack.c.0.s8 %v747
    %v749 = vlaneseq
    %v750 = vshrl.u32 %v749, 7
    %v751 = vsub.s32 %v748, %v750
    %v752 = vrot.slane %v736, %v751
    %v754 = vunpack.c.l.s4 1966171168
    %v755 = vunpack.c.0.s8 %v754
    %v756 = vlaneseq
    %v757 = vshrl.u32 %v756, 7
    %v758 = vsub.s32 %v755, %v757
    %v759 = vrot.slane %v737, %v758
    %v761 = vunpack.c.l.s4 1966171168
    %v762 = vunpack.c.0.s8 %v761
    %v763 = vlaneseq
    %v764 = vshrl.u32 %v763, 7
    %v765 = vsub.s32 %v762, %v764
    %v766 = vrot.slane %v738, %v765
    %v767 = vcombine.low %v745, %v752
    %v768 = vcombine.low %v759, %v766
    %v770 = vunpack.c.l.s4 1966171168
    %v771 = vunpack.c.0.s8 %v770
    %v772 = vlaneseq
    %v773 = vshrl.u32 %v772, 7
    %v774 = vsub.s32 %v771, %v773
    %v775 = vrot.slane %v767, %v774
    %v777 = vunpack.c.l.s4 1966171168
    %v778 = vunpack.c.0.s8 %v777
    %v779 = vlaneseq
    %v780 = vshrl.u32 %v779, 7
    %v781 = vsub.s32 %v778, %v780
    %v782 = vrot.slane %v768, %v781
    %v783 = vcombine.low %v775, %v782
    %v784 = vcombine.low %v364, %v365
    %v785 = vcombine.low %v366, %v367
    %v786 = vcombine.low %v368, %v369
    %v787 = vcombine.low %v370, %v371
    %v789 = vunpack.c.l.s4 1966171168
    %v790 = vunpack.c.0.s8 %v789
    %v791 = vlaneseq
    %v792 = vshrl.u32 %v791, 7
    %v793 = vsub.s32 %v790, %v792
    %v794 = vrot.slane %v784, %v793
    %v796 = vunpack.c.l.s4 1966171168
    %v797 = vunpack.c.0.s8 %v796
    %v798 = vlaneseq
    %v799 = vshrl.u32 %v798, 7
    %v800 = vsub.s32 %v797, %v799
    %v801 = vrot.slane %v785, %v800
    %v803 = vunpack.c.l.s4 1966171168
    %v804 = vunpack.c.0.s8 %v803
    %v805 = vlaneseq
    %v806 = vshrl.u32 %v805, 7
    %v807 = vsub.s32 %v804, %v806
    %v808 = vrot.slane %v786, %v807
    %v810 = vunpack.c.l.s4 1966171168
    %v811 = vunpack.c.0.s8 %v810
    %v812 = vlaneseq
    %v813 = vshrl.u32 %v812, 7
    %v814 = vsub.s32 %v811, %v813
    %v815 = vrot.slane %v787, %v814
    %v816 = vcombine.low %v794, %v801
    %v817 = vcombine.low %v808, %v815
    %v819 = vunpack.c.l.s4 1966171168
    %v820 = vunpack.c.0.s8 %v819
    %v821 = vlaneseq
    %v822 = vshrl.u32 %v821, 7
    %v823 = vsub.s32 %v820, %v822
    %v824 = vrot.slane %v816, %v823
    %v826 = vunpack.c.l.s4 1966171168
    %v827 = vunpack.c.0.s8 %v826
    %v828 = vlaneseq
    %v829 = vshrl.u32 %v828, 7
    %v830 = vsub.s32 %v827, %v829
    %v831 = vrot.slane %v817, %v830
    %v832 = vcombine.low %v824, %v831
    %v833 = vcombine.low %v372, %v373
    %v834 = vcombine.low %v374, %v375
    %v835 = vcombine.low %v376, %v377
    %v836 = vcombine.low %v378, %v379
    %v838 = vunpack.c.l.s4 1966171168
    %v839 = vunpack.c.0.s8 %v838
    %v840 = vlaneseq
    %v841 = vshrl.u32 %v840, 7
    %v842 = vsub.s32 %v839, %v841
    %v843 = vrot.slane %v833, %v842
    %v845 = vunpack.c.l.s4 1966171168
    %v846 = vunpack.c.0.s8 %v845
    %v847 = vlaneseq
    %v848 = vshrl.u32 %v847, 7
    %v849 = vsub.s32 %v846, %v848
    %v850 = vrot.slane %v834, %v849
    %v852 = vunpack.c.l.s4 1966171168
    %v853 = vunpack.c.0.s8 %v852
    %v854 = vlaneseq
    %v855 = vshrl.u32 %v854, 7
    %v856 = vsub.s32 %v853, %v855
    %v857 = vrot.slane %v835, %v856
    %v859 = vunpack.c.l.s4 1966171168
    %v860 = vunpack.c.0.s8 %v859
    %v861 = vlaneseq
    %v862 = vshrl.u32 %v861, 7
    %v863 = vsub.s32 %v860, %v862
    %v864 = vrot.slane %v836, %v863
    %v865 = vcombine.low %v843, %v850
    %v866 = vcombine.low %v857, %v864
    %v868 = vunpack.c.l.s4 1966171168
    %v869 = vunpack.c.0.s8 %v868
    %v870 = vlaneseq
    %v871 = vshrl.u32 %v870, 7
    %v872 = vsub.s32 %v869, %v871
    %v873 = vrot.slane %v865, %v872
    %v875 = vunpack.c.l.s4 1966171168
    %v876 = vunpack.c.0.s8 %v875
    %v877 = vlaneseq
    %v878 = vshrl.u32 %v877, 7
    %v879 = vsub.s32 %v876, %v878
    %v880 = vrot.slane %v866, %v879
    %v881 = vcombine.low %v873, %v880
    %v882 = vcombine.low %v380, %v381
    %v883 = vcombine.low %v382, %v383
    %v884 = vcombine.low %v384, %v385
    %v885 = vcombine.low %v386, %v387
    %v887 = vunpack.c.l.s4 1966171168
    %v888 = vunpack.c.0.s8 %v887
    %v889 = vlaneseq
    %v890 = vshrl.u32 %v889, 7
    %v891 = vsub.s32 %v888, %v890
    %v892 = vrot.slane %v882, %v891
    %v894 = vunpack.c.l.s4 1966171168
    %v895 = vunpack.c.0.s8 %v894
    %v896 = vlaneseq
    %v897 = vshrl.u32 %v896, 7
    %v898 = vsub.s32 %v895, %v897
    %v899 = vrot.slane %v883, %v898
    %v901 = vunpack.c.l.s4 1966171168
    %v902 = vunpack.c.0.s8 %v901
    %v903 = vlaneseq
    %v904 = vshrl.u32 %v903, 7
    %v905 = vsub.s32 %v902, %v904
    %v906 = vrot.slane %v884, %v905
    %v908 = vunpack.c.l.s4 1966171168
    %v909 = vunpack.c.0.s8 %v908
    %v910 = vlaneseq
    %v911 = vshrl.u32 %v910, 7
    %v912 = vsub.s32 %v909, %v911
    %v913 = vrot.slane %v885, %v912
    %v914 = vcombine.low %v892, %v899
    %v915 = vcombine.low %v906, %v913
    %v917 = vunpack.c.l.s4 1966171168
    %v918 = vunpack.c.0.s8 %v917
    %v919 = vlaneseq
    %v920 = vshrl.u32 %v919, 7
    %v921 = vsub.s32 %v918, %v920
    %v922 = vrot.slane %v914, %v921
    %v924 = vunpack.c.l.s4 1966171168
    %v925 = vunpack.c.0.s8 %v924
    %v926 = vlaneseq
    %v927 = vshrl.u32 %v926, 7
    %v928 = vsub.s32 %v925, %v927
    %v929 = vrot.slane %v915, %v928
    %v930 = vcombine.low %v922, %v929
    %v931 = vcombine.low %v388, %v389
    %v932 = vcombine.low %v390, %v391
    %v933 = vcombine.low %v392, %v393
    %v934 = vcombine.low %v394, %v395
    %v936 = vunpack.c.l.s4 1966171168
    %v937 = vunpack.c.0.s8 %v936
    %v938 = vlaneseq
    %v939 = vshrl.u32 %v938, 7
    %v940 = vsub.s32 %v937, %v939
    %v941 = vrot.slane %v931, %v940
    %v943 = vunpack.c.l.s4 1966171168
    %v944 = vunpack.c.0.s8 %v943
    %v945 = vlaneseq
    %v946 = vshrl.u32 %v945, 7
    %v947 = vsub.s32 %v944, %v946
    %v948 = vrot.slane %v932, %v947
    %v950 = vunpack.c.l.s4 1966171168
    %v951 = vunpack.c.0.s8 %v950
    %v952 = vlaneseq
    %v953 = vshrl.u32 %v952, 7
    %v954 = vsub.s32 %v951, %v953
    %v955 = vrot.slane %v933, %v954
    %v957 = vunpack.c.l.s4 1966171168
    %v958 = vunpack.c.0.s8 %v957
    %v959 = vlaneseq
    %v960 = vshrl.u32 %v959, 7
    %v961 = vsub.s32 %v958, %v960
    %v962 = vrot.slane %v934, %v961
    %v963 = vcombine.low %v941, %v948
    %v964 = vcombine.low %v955, %v962
    %v966 = vunpack.c.l.s4 1966171168
    %v967 = vunpack.c.0.s8 %v966
    %v968 = vlaneseq
    %v969 = vshrl.u32 %v968, 7
    %v970 = vsub.s32 %v967, %v969
    %v971 = vrot.slane %v963, %v970
    %v973 = vunpack.c.l.s4 1966171168
    %v974 = vunpack.c.0.s8 %v973
    %v975 = vlaneseq
    %v976 = vshrl.u32 %v975, 7
    %v977 = vsub.s32 %v974, %v976
    %v978 = vrot.slane %v964, %v977
    %v979 = vcombine.low %v971, %v978
    %v980 = vcombine.low %v396, %v397
    %v981 = vcombine.low %v398, %v399
    %v982 = vcombine.low %v400, %v401
    %v983 = vcombine.low %v402, %v403
    %v985 = vunpack.c.l.s4 1966171168
    %v986 = vunpack.c.0.s8 %v985
    %v987 = vlaneseq
    %v988 = vshrl.u32 %v987, 7
    %v989 = vsub.s32 %v986, %v988
    %v990 = vrot.slane %v980, %v989
    %v992 = vunpack.c.l.s4 1966171168
    %v993 = vunpack.c.0.s8 %v992
    %v994 = vlaneseq
    %v995 = vshrl.u32 %v994, 7
    %v996 = vsub.s32 %v993, %v995
    %v997 = vrot.slane %v981, %v996
    %v999 = vunpack.c.l.s4 1966171168
    %v1000 = vunpack.c.0.s8 %v999
    %v1001 = vlaneseq
    %v1002 = vshrl.u32 %v1001, 7
    %v1003 = vsub.s32 %v1000, %v1002
    %v1004 = vrot.slane %v982, %v1003
    %v1006 = vunpack.c.l.s4 1966171168
    %v1007 = vunpack.c.0.s8 %v1006
    %v1008 = vlaneseq
    %v1009 = vshrl.u32 %v1008, 7
    %v1010 = vsub.s32 %v1007, %v1009
    %v1011 = vrot.slane %v983, %v1010
    %v1012 = vcombine.low %v990, %v997
    %v1013 = vcombine.low %v1004, %v1011
    %v1015 = vunpack.c.l.s4 1966171168
    %v1016 = vunpack.c.0.s8 %v1015
    %v1017 = vlaneseq
    %v1018 = vshrl.u32 %v1017, 7
    %v1019 = vsub.s32 %v1016, %v1018
    %v1020 = vrot.slane %v1012, %v1019
    %v1022 = vunpack.c.l.s4 1966171168
    %v1023 = vunpack.c.0.s8 %v1022
    %v1024 = vlaneseq
    %v1025 = vshrl.u32 %v1024, 7
    %v1026 = vsub.s32 %v1023, %v1025
    %v1027 = vrot.slane %v1013, %v1026
    %v1028 = vcombine.low %v1020, %v1027
    %v1029 = vcombine.low %v404, %v405
    %v1030 = vcombine.low %v406, %v407
    %v1031 = vcombine.low %v408, %v409
    %v1032 = vcombine.low %v410, %v411
    %v1034 = vunpack.c.l.s4 1966171168
    %v1035 = vunpack.c.0.s8 %v1034
    %v1036 = vlaneseq
    %v1037 = vshrl.u32 %v1036, 7
    %v1038 = vsub.s32 %v1035, %v1037
    %v1039 = vrot.slane %v1029, %v1038
    %v1041 = vunpack.c.l.s4 1966171168
    %v1042 = vunpack.c.0.s8 %v1041
    %v1043 = vlaneseq
    %v1044 = vshrl.u32 %v1043, 7
    %v1045 = vsub.s32 %v1042, %v1044
    %v1046 = vrot.slane %v1030, %v1045
    %v1048 = vunpack.c.l.s4 1966171168
    %v1049 = vunpack.c.0.s8 %v1048
    %v1050 = vlaneseq
    %v1051 = vshrl.u32 %v1050, 7
    %v1052 = vsub.s32 %v1049, %v1051
    %v1053 = vrot.slane %v1031, %v1052
    %v1055 = vunpack.c.l.s4 1966171168
    %v1056 = vunpack.c.0.s8 %v1055
    %v1057 = vlaneseq
    %v1058 = vshrl.u32 %v1057, 7
    %v1059 = vsub.s32 %v1056, %v1058
    %v1060 = vrot.slane %v1032, %v1059
    %v1061 = vcombine.low %v1039, %v1046
    %v1062 = vcombine.low %v1053, %v1060
    %v1064 = vunpack.c.l.s4 1966171168
    %v1065 = vunpack.c.0.s8 %v1064
    %v1066 = vlaneseq
    %v1067 = vshrl.u32 %v1066, 7
    %v1068 = vsub.s32 %v1065, %v1067
    %v1069 = vrot.slane %v1061, %v1068
    %v1071 = vunpack.c.l.s4 1966171168
    %v1072 = vunpack.c.0.s8 %v1071
    %v1073 = vlaneseq
    %v1074 = vshrl.u32 %v1073, 7
    %v1075 = vsub.s32 %v1072, %v1074
    %v1076 = vrot.slane %v1062, %v1075
    %v1077 = vcombine.low %v1069, %v1076
    %v1078 = vcombine.low %v412, %v413
    %v1079 = vcombine.low %v414, %v415
    %v1080 = vcombine.low %v416, %v417
    %v1081 = vcombine.low %v418, %v419
    %v1083 = vunpack.c.l.s4 1966171168
    %v1084 = vunpack.c.0.s8 %v1083
    %v1085 = vlaneseq
    %v1086 = vshrl.u32 %v1085, 7
    %v1087 = vsub.s32 %v1084, %v1086
    %v1088 = vrot.slane %v1078, %v1087
    %v1090 = vunpack.c.l.s4 1966171168
    %v1091 = vunpack.c.0.s8 %v1090
    %v1092 = vlaneseq
    %v1093 = vshrl.u32 %v1092, 7
    %v1094 = vsub.s32 %v1091, %v1093
    %v1095 = vrot.slane %v1079, %v1094
    %v1097 = vunpack.c.l.s4 1966171168
    %v1098 = vunpack.c.0.s8 %v1097
    %v1099 = vlaneseq
    %v1100 = vshrl.u32 %v1099, 7
    %v1101 = vsub.s32 %v1098, %v1100
    %v1102 = vrot.slane %v1080, %v1101
    %v1104 = vunpack.c.l.s4 1966171168
    %v1105 = vunpack.c.0.s8 %v1104
    %v1106 = vlaneseq
    %v1107 = vshrl.u32 %v1106, 7
    %v1108 = vsub.s32 %v1105, %v1107
    %v1109 = vrot.slane %v1081, %v1108
    %v1110 = vcombine.low %v1088, %v1095
    %v1111 = vcombine.low %v1102, %v1109
    %v1113 = vunpack.c.l.s4 1966171168
    %v1114 = vunpack.c.0.s8 %v1113
    %v1115 = vlaneseq
    %v1116 = vshrl.u32 %v1115, 7
    %v1117 = vsub.s32 %v1114, %v1116
    %v1118 = vrot.slane %v1110, %v1117
    %v1120 = vunpack.c.l.s4 1966171168
    %v1121 = vunpack.c.0.s8 %v1120
    %v1122 = vlaneseq
    %v1123 = vshrl.u32 %v1122, 7
    %v1124 = vsub.s32 %v1121, %v1123
    %v1125 = vrot.slane %v1111, %v1124
    %v1126 = vcombine.low %v1118, %v1125
    %v1127 = vcombine.low %v420, %v421
    %v1128 = vcombine.low %v422, %v423
    %v1129 = vcombine.low %v424, %v425
    %v1130 = vcombine.low %v426, %v427
    %v1132 = vunpack.c.l.s4 1966171168
    %v1133 = vunpack.c.0.s8 %v1132
    %v1134 = vlaneseq
    %v1135 = vshrl.u32 %v1134, 7
    %v1136 = vsub.s32 %v1133, %v1135
    %v1137 = vrot.slane %v1127, %v1136
    %v1139 = vunpack.c.l.s4 1966171168
    %v1140 = vunpack.c.0.s8 %v1139
    %v1141 = vlaneseq
    %v1142 = vshrl.u32 %v1141, 7
    %v1143 = vsub.s32 %v1140, %v1142
    %v1144 = vrot.slane %v1128, %v1143
    %v1146 = vunpack.c.l.s4 1966171168
    %v1147 = vunpack.c.0.s8 %v1146
    %v1148 = vlaneseq
    %v1149 = vshrl.u32 %v1148, 7
    %v1150 = vsub.s32 %v1147, %v1149
    %v1151 = vrot.slane %v1129, %v1150
    %v1153 = vunpack.c.l.s4 1966171168
    %v1154 = vunpack.c.0.s8 %v1153
    %v1155 = vlaneseq
    %v1156 = vshrl.u32 %v1155, 7
    %v1157 = vsub.s32 %v1154, %v1156
    %v1158 = vrot.slane %v1130, %v1157
    %v1159 = vcombine.low %v1137, %v1144
    %v1160 = vcombine.low %v1151, %v1158
    %v1162 = vunpack.c.l.s4 1966171168
    %v1163 = vunpack.c.0.s8 %v1162
    %v1164 = vlaneseq
    %v1165 = vshrl.u32 %v1164, 7
    %v1166 = vsub.s32 %v1163, %v1165
    %v1167 = vrot.slane %v1159, %v1166
    %v1169 = vunpack.c.l.s4 1966171168
    %v1170 = vunpack.c.0.s8 %v1169
    %v1171 = vlaneseq
    %v1172 = vshrl.u32 %v1171, 7
    %v1173 = vsub.s32 %v1170, %v1172
    %v1174 = vrot.slane %v1160, %v1173
    %v1175 = vcombine.low %v1167, %v1174
    %v1176 = vcombine.low %v428, %v429
    %v1177 = vcombine.low %v430, %v431
    %v1178 = vcombine.low %v432, %v433
    %v1179 = vcombine.low %v434, %v435
    %v1181 = vunpack.c.l.s4 1966171168
    %v1182 = vunpack.c.0.s8 %v1181
    %v1183 = vlaneseq
    %v1184 = vshrl.u32 %v1183, 7
    %v1185 = vsub.s32 %v1182, %v1184
    %v1186 = vrot.slane %v1176, %v1185
    %v1188 = vunpack.c.l.s4 1966171168
    %v1189 = vunpack.c.0.s8 %v1188
    %v1190 = vlaneseq
    %v1191 = vshrl.u32 %v1190, 7
    %v1192 = vsub.s32 %v1189, %v1191
    %v1193 = vrot.slane %v1177, %v1192
    %v1195 = vunpack.c.l.s4 1966171168
    %v1196 = vunpack.c.0.s8 %v1195
    %v1197 = vlaneseq
    %v1198 = vshrl.u32 %v1197, 7
    %v1199 = vsub.s32 %v1196, %v1198
    %v1200 = vrot.slane %v1178, %v1199
    %v1202 = vunpack.c.l.s4 1966171168
    %v1203 = vunpack.c.0.s8 %v1202
    %v1204 = vlaneseq
    %v1205 = vshrl.u32 %v1204, 7
    %v1206 = vsub.s32 %v1203, %v1205
    %v1207 = vrot.slane %v1179, %v1206
    %v1208 = vcombine.low %v1186, %v1193
    %v1209 = vcombine.low %v1200, %v1207
    %v1211 = vunpack.c.l.s4 1966171168
    %v1212 = vunpack.c.0.s8 %v1211
    %v1213 = vlaneseq
    %v1214 = vshrl.u32 %v1213, 7
    %v1215 = vsub.s32 %v1212, %v1214
    %v1216 = vrot.slane %v1208, %v1215
    %v1218 = vunpack.c.l.s4 1966171168
    %v1219 = vunpack.c.0.s8 %v1218
    %v1220 = vlaneseq
    %v1221 = vshrl.u32 %v1220, 7
    %v1222 = vsub.s32 %v1219, %v1221
    %v1223 = vrot.slane %v1209, %v1222
    %v1224 = vcombine.low %v1216, %v1223
    %v1225 = vcombine.low %v436, %v437
    %v1226 = vcombine.low %v438, %v439
    %v1227 = vcombine.low %v440, %v441
    %v1228 = vcombine.low %v442, %v443
    %v1230 = vunpack.c.l.s4 1966171168
    %v1231 = vunpack.c.0.s8 %v1230
    %v1232 = vlaneseq
    %v1233 = vshrl.u32 %v1232, 7
    %v1234 = vsub.s32 %v1231, %v1233
    %v1235 = vrot.slane %v1225, %v1234
    %v1237 = vunpack.c.l.s4 1966171168
    %v1238 = vunpack.c.0.s8 %v1237
    %v1239 = vlaneseq
    %v1240 = vshrl.u32 %v1239, 7
    %v1241 = vsub.s32 %v1238, %v1240
    %v1242 = vrot.slane %v1226, %v1241
    %v1244 = vunpack.c.l.s4 1966171168
    %v1245 = vunpack.c.0.s8 %v1244
    %v1246 = vlaneseq
    %v1247 = vshrl.u32 %v1246, 7
    %v1248 = vsub.s32 %v1245, %v1247
    %v1249 = vrot.slane %v1227, %v1248
    %v1251 = vunpack.c.l.s4 1966171168
    %v1252 = vunpack.c.0.s8 %v1251
    %v1253 = vlaneseq
    %v1254 = vshrl.u32 %v1253, 7
    %v1255 = vsub.s32 %v1252, %v1254
    %v1256 = vrot.slane %v1228, %v1255
    %v1257 = vcombine.low %v1235, %v1242
    %v1258 = vcombine.low %v1249, %v1256
    %v1260 = vunpack.c.l.s4 1966171168
    %v1261 = vunpack.c.0.s8 %v1260
    %v1262 = vlaneseq
    %v1263 = vshrl.u32 %v1262, 7
    %v1264 = vsub.s32 %v1261, %v1263
    %v1265 = vrot.slane %v1257, %v1264
    %v1267 = vunpack.c.l.s4 1966171168
    %v1268 = vunpack.c.0.s8 %v1267
    %v1269 = vlaneseq
    %v1270 = vshrl.u32 %v1269, 7
    %v1271 = vsub.s32 %v1268, %v1270
    %v1272 = vrot.slane %v1258, %v1271
    %v1273 = vcombine.low %v1265, %v1272
    %v1274 = vcombine.low %v444, %v445
    %v1275 = vcombine.low %v446, %v447
    %v1276 = vcombine.low %v448, %v449
    %v1277 = vcombine.low %v450, %v451
    %v1279 = vunpack.c.l.s4 1966171168
    %v1280 = vunpack.c.0.s8 %v1279
    %v1281 = vlaneseq
    %v1282 = vshrl.u32 %v1281, 7
    %v1283 = vsub.s32 %v1280, %v1282
    %v1284 = vrot.slane %v1274, %v1283
    %v1286 = vunpack.c.l.s4 1966171168
    %v1287 = vunpack.c.0.s8 %v1286
    %v1288 = vlaneseq
    %v1289 = vshrl.u32 %v1288, 7
    %v1290 = vsub.s32 %v1287, %v1289
    %v1291 = vrot.slane %v1275, %v1290
    %v1293 = vunpack.c.l.s4 1966171168
    %v1294 = vunpack.c.0.s8 %v1293
    %v1295 = vlaneseq
    %v1296 = vshrl.u32 %v1295, 7
    %v1297 = vsub.s32 %v1294, %v1296
    %v1298 = vrot.slane %v1276, %v1297
    %v1300 = vunpack.c.l.s4 1966171168
    %v1301 = vunpack.c.0.s8 %v1300
    %v1302 = vlaneseq
    %v1303 = vshrl.u32 %v1302, 7
    %v1304 = vsub.s32 %v1301, %v1303
    %v1305 = vrot.slane %v1277, %v1304
    %v1306 = vcombine.low %v1284, %v1291
    %v1307 = vcombine.low %v1298, %v1305
    %v1309 = vunpack.c.l.s4 1966171168
    %v1310 = vunpack.c.0.s8 %v1309
    %v1311 = vlaneseq
    %v1312 = vshrl.u32 %v1311, 7
    %v1313 = vsub.s32 %v1310, %v1312
    %v1314 = vrot.slane %v1306, %v1313
    %v1316 = vunpack.c.l.s4 1966171168
    %v1317 = vunpack.c.0.s8 %v1316
    %v1318 = vlaneseq
    %v1319 = vshrl.u32 %v1318, 7
    %v1320 = vsub.s32 %v1317, %v1319
    %v1321 = vrot.slane %v1307, %v1320
    %v1322 = vcombine.low %v1314, %v1321
    %v1323 = vcombine.low %v452, %v453
    %v1324 = vcombine.low %v454, %v455
    %v1325 = vcombine.low %v456, %v457
    %v1326 = vcombine.low %v458, %v459
    %v1328 = vunpack.c.l.s4 1966171168
    %v1329 = vunpack.c.0.s8 %v1328
    %v1330 = vlaneseq
    %v1331 = vshrl.u32 %v1330, 7
    %v1332 = vsub.s32 %v1329, %v1331
    %v1333 = vrot.slane %v1323, %v1332
    %v1335 = vunpack.c.l.s4 1966171168
    %v1336 = vunpack.c.0.s8 %v1335
    %v1337 = vlaneseq
    %v1338 = vshrl.u32 %v1337, 7
    %v1339 = vsub.s32 %v1336, %v1338
    %v1340 = vrot.slane %v1324, %v1339
    %v1342 = vunpack.c.l.s4 1966171168
    %v1343 = vunpack.c.0.s8 %v1342
    %v1344 = vlaneseq
    %v1345 = vshrl.u32 %v1344, 7
    %v1346 = vsub.s32 %v1343, %v1345
    %v1347 = vrot.slane %v1325, %v1346
    %v1349 = vunpack.c.l.s4 1966171168
    %v1350 = vunpack.c.0.s8 %v1349
    %v1351 = vlaneseq
    %v1352 = vshrl.u32 %v1351, 7
    %v1353 = vsub.s32 %v1350, %v1352
    %v1354 = vrot.slane %v1326, %v1353
    %v1355 = vcombine.low %v1333, %v1340
    %v1356 = vcombine.low %v1347, %v1354
    %v1358 = vunpack.c.l.s4 1966171168
    %v1359 = vunpack.c.0.s8 %v1358
    %v1360 = vlaneseq
    %v1361 = vshrl.u32 %v1360, 7
    %v1362 = vsub.s32 %v1359, %v1361
    %v1363 = vrot.slane %v1355, %v1362
    %v1365 = vunpack.c.l.s4 1966171168
    %v1366 = vunpack.c.0.s8 %v1365
    %v1367 = vlaneseq
    %v1368 = vshrl.u32 %v1367, 7
    %v1369 = vsub.s32 %v1366, %v1368
    %v1370 = vrot.slane %v1356, %v1369
    %v1371 = vcombine.low %v1363, %v1370
    %1388 = vmatprep.subr.mxu0 0.0
    %1389 = vmatpush1.xpose.msra.mxu0 %v636
    %1390 = vmatprep.subr.mxu0 0.0
    %1391 = vmatpush1.xpose.msra.mxu0 %v685
    %1392 = vmatprep.subr.mxu0 0.0
    %1393 = vmatpush1.xpose.msra.mxu0 %v734
    %1394 = vmatprep.subr.mxu0 0.0
    %1395 = vmatpush1.xpose.msra.mxu0 %v783
    %1396 = vmatprep.subr.mxu0 0.0
    %1397 = vmatpush1.xpose.msra.mxu0 %v832
    %1398 = vmatprep.subr.mxu0 0.0
    %1399 = vmatpush1.xpose.msra.mxu0 %v881
    %1400 = vmatprep.subr.mxu0 0.0
    %1401 = vmatpush1.xpose.msra.mxu0 %v930
    %1402 = vmatprep.subr.mxu0 0.0
    %1403 = vmatpush1.xpose.msra.mxu0 %v979
    %1404 = vmatprep.subr.mxu0 0.0
    %1405 = vmatpush1.xpose.msra.mxu0 %v1028
    %1406 = vmatprep.subr.mxu0 0.0
    %1407 = vmatpush1.xpose.msra.mxu0 %v1077
    %1408 = vmatprep.subr.mxu0 0.0
    %1409 = vmatpush1.xpose.msra.mxu0 %v1126
    %1410 = vmatprep.subr.mxu0 0.0
    %1411 = vmatpush1.xpose.msra.mxu0 %v1175
    %1412 = vmatprep.subr.mxu0 0.0
    %1413 = vmatpush1.xpose.msra.mxu0 %v1224
    %1414 = vmatprep.subr.mxu0 0.0
    %1415 = vmatpush1.xpose.msra.mxu0 %v1273
    %1416 = vmatprep.subr.mxu0 0.0
    %1417 = vmatpush1.xpose.msra.mxu0 %v1322
    %1418 = vmatprep.subr.mxu0 0.0
    %1419 = vmatpush1.xpose.msra.mxu0 %v1371
    %1420 = vmatprep.subr.mxu0 0.0
    %1421 = vmatpush1.xpose.msra.mxu0 0.0
    %1422 = vmatprep.subr.mxu0 0.0
    %1423 = vmatpush1.xpose.msra.mxu0 0.0
    %1424 = vmatprep.subr.mxu0 0.0
    %1425 = vmatpush1.xpose.msra.mxu0 0.0
    %1426 = vmatprep.subr.mxu0 0.0
    %1427 = vmatpush1.xpose.msra.mxu0 0.0
    %1428 = vmatprep.subr.mxu0 0.0
    %1429 = vmatpush1.xpose.msra.mxu0 0.0
    %1430 = vmatprep.subr.mxu0 0.0
    %1431 = vmatpush1.xpose.msra.mxu0 0.0
    %1432 = vmatprep.subr.mxu0 0.0
    %1433 = vmatpush1.xpose.msra.mxu0 0.0
    %1434 = vmatprep.subr.mxu0 0.0
    %1435 = vmatpush1.xpose.msra.mxu0 0.0
    %1436 = vmatprep.subr.mxu0 0.0
    %1437 = vmatpush1.xpose.msra.mxu0 0.0
    %1438 = vmatprep.subr.mxu0 0.0
    %1439 = vmatpush1.xpose.msra.mxu0 0.0
    %1440 = vmatprep.subr.mxu0 0.0
    %1441 = vmatpush1.xpose.msra.mxu0 0.0
    %1442 = vmatprep.subr.mxu0 0.0
    %1443 = vmatpush1.xpose.msra.mxu0 0.0
    %1444 = vmatprep.subr.mxu0 0.0
    %1445 = vmatpush1.xpose.msra.mxu0 0.0
    %1446 = vmatprep.subr.mxu0 0.0
    %1447 = vmatpush1.xpose.msra.mxu0 0.0
    %1448 = vmatprep.subr.mxu0 0.0
    %1449 = vmatpush1.xpose.msra.mxu0 0.0
    %1450 = vmatprep.subr.mxu0 0.0
    %1451 = vmatpush1.xpose.msra.mxu0 0.0
    %1452 = vmatprep.mubr.f32.mxu0 0.0
    %1453 = vmatmul.mubr.f32.gmra.mrb[0].mxu0 1.0
    %v1454 = vpop.f32.mrb[0].mxu0
    %v1455 = vadd.f32 0.0, %v1454
    %v1456 = vpop.f32.mrb[0].mxu0
    %1457 = vdwg.mxu0
    %1458 = vst [vmem:[#allocation8] sm:$0x1] %v1455
    %v1459 = vld [vmem:[%s5] sm:$0x1]
    %v1460 = vld [vmem:[%s3] sm:$0x1]
    %v1461 = vld [vmem:[%s4] sm:$0x1]
    %v1462 = vsub.f32 0.0, %v1455
    %v1463 = vmul.f32 %v1462, 1.442695
    %v1464 = vpow.pop %v1463
    %v1465 = vadd.f32 %v1464, 1.0
    %v1466 = vrcp.pop %v1465
    %vm1467 = vcmp.gt.f32.partialorder %v1459, 0.0
    %v1468 = vadd.f32 %v1460, %v1461
    %v1469 = vsel %vm1467, %v1468, 1.0
    %v1470 = vrcp.pop %v1469
    %v1471 = vmul.f32 %v1460, %v1470
    %v1472 = vrsqrt.pop %v1471
    %v1473 = vmul.f32 %v1471, %v1472
    %vm1474 = vcmp.eq.f32.partialorder %v1471, inf
    %v1475 = vsel %vm1474, %v1471, %v1473
    %vm1476 = vcmp.eq.f32.partialorder %v1471, 0.0
    %v1477 = vand.u32 %v1471, 2147483648
    %v1478 = vsel %vm1476, %v1477, %v1475
    %v1479 = vsub.f32 %v1466, %v1478
    %v1480 = vmul.f32 %v1459, %v1479
    %v1481 = vmul.f32 %v1480, %v1479
    %1482 = vst [vmem:[#allocation10] sm:$0x1] %v1481
    // Predicated region
    $region36: #{tpu_custom_call.1} parent=1 // pred_check
      _
    $region37: #{tpu_custom_call.1} parent=1 // pred_check_branch
      %1484 = sbr.rel (0) target = $region39
    $region38: #{tpu_custom_call.1} parent=1 // pred_region
      %s1486 = ssub.s32 16, 16
      %1487 = vsyncadd [#allocation9], %s1486
      %s1489 = sshll.u32 [#allocation8], 4
      %s1490 = int_to_ptr.vmem [resolvable:$true] %s1489
      %1492 = dma.vmem_to_hbm [thread:$0]  %s1490, 16, %s6, [#allocation9]
    $region39: #{tpu_custom_call.1} parent=1 // pred_fallthru
      _
    // Predicated region
    $region40: #{tpu_custom_call.1} parent=1 // pred_check
      _
    $region41: #{tpu_custom_call.1} parent=1 // pred_check_branch
      %1494 = sbr.rel (0) target = $region43
    $region42: #{tpu_custom_call.1} parent=1 // pred_region
      %s1496 = ssub.s32 16, 16
      %1497 = vsyncadd [#allocation11], %s1496
      %s1499 = sshll.u32 [#allocation10], 4
      %s1500 = int_to_ptr.vmem [resolvable:$true] %s1499
      %1502 = dma.vmem_to_hbm [thread:$0]  %s1500, 16, %s7, [#allocation11]
    $region43: #{tpu_custom_call.1} parent=1 // pred_fallthru
      _
    // Predicated region
    $region44: #{tpu_custom_call.1} parent=1 // pred_check
      _
    $region45: #{tpu_custom_call.1} parent=1 // pred_check_branch
      %1504 = sbr.rel (0) target = $region47
    $region46: #{tpu_custom_call.1} parent=1 // pred_region
      %1505 = dma.done [#allocation9], 16
    $region47: #{tpu_custom_call.1} parent=1 // pred_fallthru
      _
    // Predicated region
    $region48: #{tpu_custom_call.1} parent=1 // pred_check
      _
    $region49: #{tpu_custom_call.1} parent=1 // pred_check_branch
      %1507 = sbr.rel (0) target = $region51
    $region50: #{tpu_custom_call.1} parent=1 // pred_region
      %1508 = dma.done [#allocation11], 16
    $region51: #{tpu_custom_call.1} parent=1 // pred_fallthru
      _
    %1509 = vsyncpa [#allocation9], 1
    %1510 = vsyncpa [#allocation11], 1
  %1511 = vsyncmov [#allocation4]
  %s1512 = vpop.sfrf %1511
  %p1513 = scmp.eq.s32.totalorder %s1512, 0
  %p1514 = pneg %p1513
  %1516 = shalt.err (%p1514)

</llo_original>
